<compile_context>
chip_gen: v7x
topology: tpu7x:2x2x1
jax: 0.10.0
libtpu: 0.0.40
codegen_flags: <defaults>
</compile_context>

<pallas_src>
import functools

import jax
import jax.numpy as jnp
from jax.experimental import pallas as pl
from jax.experimental.pallas import tpu as pltpu


def _discriminator_kernel(
    ids_ref,     # (L, 1)   int32 token ids for batch element 0 (time-major)
    emb_ref,     # (V, H)   embedding table
    w_ref,       # (H, 6H)  packed weights [wir|wiz|win | whr|whz|whn]
    small_ref,   # (1, 4H+L*H+1) packed [bir+bhr|biz+bhz|bin | bhn | wout^T | bout]
    feat_ref,    # out: (B, L*H)
    out_ref,     # out: (B, 1)
    *,
    L, B, H, V,
):
    # ---- Unpack the fused small operand (one DMA instead of four).
    small = small_ref[...]                                            # (1, 4H+L*H+1)
    bi = small[:, 0:3 * H]                                            # (1, 3H)
    bhn = small[:, 3 * H:4 * H]                                       # (1, H)
    wout = small[:, 4 * H:4 * H + L * H]                              # (1, L*H)
    bout = small[:, 4 * H + L * H:4 * H + L * H + 1]                  # (1, 1)

    # ---- Hoisted weight load: one VMEM read, reused every recurrence step.
    w = w_ref[...]                                                    # (H, 6H)
    wi = w[:, 0:3 * H]                                                # (H, 3H)
    wh = w[:, 3 * H:6 * H]                                            # (H, 3H)

    # ---- Fused embedding gather (one-hot matmul) for batch row 0 only, plus
    #      all input projections hoisted out of the recurrence.
    ids = ids_ref[...]                                                # (L, 1) i32
    onehot = (ids == jax.lax.broadcasted_iota(jnp.int32, (L, V), 1)
              ).astype(jnp.float32)                                   # (L, V)
    emb_all = jnp.dot(onehot, emb_ref[...],
                      preferred_element_type=jnp.float32)             # (L, H)
    xw_all = (jnp.dot(emb_all, wi, preferred_element_type=jnp.float32)
              + bi)                                                   # (L, 3H)

    # ---- Serial GRU recurrence, batch row 0 only: one packed hidden matmul
    #      per step (other batch rows are dead — the module records only
    #      output[0, 0] at each step).
    h = jnp.zeros((1, H), dtype=jnp.float32)
    rows = []
    for t in range(L):                                 # static unroll (L small)
        xw_t = xw_all[t:t + 1, :]                                     # (1, 3H)
        gh = jnp.dot(h, wh, preferred_element_type=jnp.float32)       # (1, 3H)
        pre_rz = xw_t[:, 0:2 * H] + gh[:, 0:2 * H]     # n-gate lanes not added (dead)
        r = jax.nn.sigmoid(pre_rz[:, 0:H])
        z = jax.nn.sigmoid(pre_rz[:, H:2 * H])
        n = jnp.tanh(xw_t[:, 2 * H:3 * H] + r * (gh[:, 2 * H:3 * H] + bhn))
        h = (1.0 - z) * n + z * h                                     # (1, H)
        rows.append(h)

    # ---- Single lane-dense store of feat (every row identical by construction).
    feat_row = jnp.concatenate(rows, axis=1)                          # (1, L*H)
    feat_ref[...] = jnp.broadcast_to(feat_row, (B, L * H))

    # ---- Final Linear(L*H -> 1) as a VPU dot + lane reduce, then sigmoid.
    logit = jnp.sum(feat_row * wout, axis=1, keepdims=True) + bout    # (1, 1)
    out_ref[...] = jnp.broadcast_to(jax.nn.sigmoid(logit), (B, 1))


@jax.jit
def discriminator_forward(x, params):
    """x: (L, B) int32 token ids. Returns (feat (B, L*H), out (B, 1))."""
    (emb_table, wir, wiz, win, whr, whz, whn,
     bir, biz, bin_, bhr, bhz, bhn, wout, bout) = params
    L, B = x.shape
    V, H = emb_table.shape

    # Parameter packing — fused/constant-folded into the single jit dispatch.
    w_packed = jnp.concatenate([wir, wiz, win, whr, whz, whn], axis=1)  # (H, 6H)
    small = jnp.concatenate(
        [bir + bhr, biz + bhz, bin_, bhn, wout.T, bout], axis=1)        # (1, 4H+L*H+1)
    ids = x[:, 0:1].astype(jnp.int32)                                   # (L, 1), batch row 0

    vmem = pl.BlockSpec(memory_space=pltpu.MemorySpace.VMEM)
    kernel = functools.partial(_discriminator_kernel, L=L, B=B, H=H, V=V)
    feat, out = pl.pallas_call(
        kernel,
        out_shape=(
            jax.ShapeDtypeStruct((B, L * H), jnp.float32),
            jax.ShapeDtypeStruct((B, 1), jnp.float32),
        ),
        in_specs=[vmem] * 4,
        out_specs=(vmem, vmem),
    )(ids, emb_table, w_packed, small)
    return feat, out


def _reference_forward(x, params):
    """Pure-JAX reference mirroring the PyTorch module exactly."""
    (emb_table, wir, wiz, win, whr, whz, whn,
     bir, biz, bin_, bhr, bhz, bhn, wout, bout) = params
    L, B = x.shape
    H = emb_table.shape[1]
    h = jnp.zeros((B, H), jnp.float32)
    cols = []
    for t in range(L):
        xt = emb_table[x[t]]
        r = jax.nn.sigmoid(xt @ wir + bir + h @ whr + bhr)
        z = jax.nn.sigmoid(xt @ wiz + biz + h @ whz + bhz)
        n = jnp.tanh(xt @ win + bin_ + r * (h @ whn + bhn))
        h = (1.0 - z) * n + z * h
        cols.append(jnp.broadcast_to(h[0:1, :], (B, H)))   # outputs[ei] = output[0, 0]
    feat = jnp.concatenate(cols, axis=1)                   # permute(1,0,2) + flatten
    out = jax.nn.sigmoid(feat @ wout + bout)
    return feat, out


def init_params(key, input_size, hidden_size, input_length):
    H = hidden_size
    scale = 1.0 / jnp.sqrt(jnp.float32(H))
    ks = jax.random.split(key, 16)
    u = lambda k, shape: jax.random.uniform(k, shape, jnp.float32, -scale, scale)
    emb_table = jax.random.normal(ks[0], (input_size, H), jnp.float32)
    wir, wiz, win = u(ks[1], (H, H)), u(ks[2], (H, H)), u(ks[3], (H, H))
    whr, whz, whn = u(ks[4], (H, H)), u(ks[5], (H, H)), u(ks[6], (H, H))
    bir, biz, bin_ = u(ks[7], (1, H)), u(ks[8], (1, H)), u(ks[9], (1, H))
    bhr, bhz, bhn = u(ks[10], (1, H)), u(ks[11], (1, H)), u(ks[12], (1, H))
    out_scale = 1.0 / jnp.sqrt(jnp.float32(input_length * H))
    wout = jax.random.uniform(ks[13], (input_length * H, 1), jnp.float32,
                              -out_scale, out_scale)
    bout = jax.random.uniform(ks[14], (1, 1), jnp.float32, -out_scale, out_scale)
    return (emb_table, wir, wiz, win, whr, whz, whn,
            bir, biz, bin_, bhr, bhz, bhn, wout, bout)


if __name__ == "__main__":
    INPUT_SIZE = 16      # vocab size
    HIDDEN_SIZE = 32
    INPUT_LENGTH = 8
    BATCH_SIZE = 4

    key = jax.random.PRNGKey(0)
    kp, kx = jax.random.split(key)
    params = init_params(kp, INPUT_SIZE, HIDDEN_SIZE, INPUT_LENGTH)
    x = jax.random.randint(kx, (INPUT_LENGTH, BATCH_SIZE), 0, INPUT_SIZE,
                           dtype=jnp.int32)

    feat, out = jax.block_until_ready(discriminator_forward(x, params))
    feat_ref, out_ref = _reference_forward(x, params)

    assert feat.shape == (BATCH_SIZE, INPUT_LENGTH * HIDDEN_SIZE)
    assert out.shape == (BATCH_SIZE, 1)
    assert jnp.allclose(feat, feat_ref, atol=1e-5, rtol=1e-5)
    assert jnp.allclose(out, out_ref, atol=1e-5, rtol=1e-5)
    print("KERNEL_OK")
</pallas_src>

<mosaic_0001>
module attributes {stable_mosaic.version = 11 : i64} {
  func.func @_discriminator_kernel(%arg0: memref<8x1xi32, #tpu.memory_space<vmem>>, %arg1: memref<16x32xf32, #tpu.memory_space<vmem>>, %arg2: memref<32x192xf32, #tpu.memory_space<vmem>>, %arg3: memref<1x385xf32, #tpu.memory_space<vmem>>, %arg4: memref<4x256xf32, #tpu.memory_space<vmem>>, %arg5: memref<4x1xf32, #tpu.memory_space<vmem>>) attributes {dimension_semantics = [], scalar_prefetch = 0 : i64, scratch_operands = 0 : i64, tpu.core_type = #tpu.core_type<tc>} {
    %c0 = arith.constant 0 : index
    %c0_0 = arith.constant 0 : index
    %0 = vector.load %arg3[%c0, %c0_0] : memref<1x385xf32, #tpu.memory_space<vmem>>, vector<1x385xf32>
    %1 = vector.extract_strided_slice %0 {offsets = [0, 0], sizes = [1, 96], strides = [1, 1]} : vector<1x385xf32> to vector<1x96xf32>
    %2 = vector.extract_strided_slice %0 {offsets = [0, 96], sizes = [1, 32], strides = [1, 1]} : vector<1x385xf32> to vector<1x32xf32>
    %3 = vector.extract_strided_slice %0 {offsets = [0, 128], sizes = [1, 256], strides = [1, 1]} : vector<1x385xf32> to vector<1x256xf32>
    %4 = vector.extract_strided_slice %0 {offsets = [0, 384], sizes = [1, 1], strides = [1, 1]} : vector<1x385xf32> to vector<1x1xf32>
    %c0_1 = arith.constant 0 : index
    %c0_2 = arith.constant 0 : index
    %5 = vector.load %arg2[%c0_1, %c0_2] : memref<32x192xf32, #tpu.memory_space<vmem>>, vector<32x192xf32>
    %6 = vector.extract_strided_slice %5 {offsets = [0, 0], sizes = [32, 96], strides = [1, 1]} : vector<32x192xf32> to vector<32x96xf32>
    %7 = vector.extract_strided_slice %5 {offsets = [0, 96], sizes = [32, 96], strides = [1, 1]} : vector<32x192xf32> to vector<32x96xf32>
    %c0_3 = arith.constant 0 : index
    %c0_4 = arith.constant 0 : index
    %8 = vector.load %arg0[%c0_3, %c0_4] : memref<8x1xi32, #tpu.memory_space<vmem>>, vector<8x1xi32>
    %9 = tpu.iota {dimensions = array<i32: 1>} : vector<8x16xi32>
    %10 = vector.broadcast %8 : vector<8x1xi32> to vector<8x16xi32>
    %11 = arith.cmpi eq, %10, %9 : vector<8x16xi32>
    %12 = arith.extui %11 : vector<8x16xi1> to vector<8x16xi32>
    %13 = arith.sitofp %12 : vector<8x16xi32> to vector<8x16xf32>
    %c0_5 = arith.constant 0 : index
    %c0_6 = arith.constant 0 : index
    %14 = vector.load %arg1[%c0_5, %c0_6] : memref<16x32xf32, #tpu.memory_space<vmem>>, vector<16x32xf32>
    %cst = arith.constant dense<0.000000e+00> : vector<8x32xf32>
    %15 = tpu.matmul %13, %14, %cst {dimension_numbers = #tpu.dot_dimension_numbers<[1], [0], [0], [1], [0, 0, 1, 1], [], []>} : vector<8x16xf32>, vector<16x32xf32>, vector<8x32xf32> -> vector<8x32xf32>
    %cst_7 = arith.constant dense<0.000000e+00> : vector<8x96xf32>
    %16 = tpu.matmul %15, %6, %cst_7 {dimension_numbers = #tpu.dot_dimension_numbers<[1], [0], [0], [1], [0, 0, 1, 1], [], []>} : vector<8x32xf32>, vector<32x96xf32>, vector<8x96xf32> -> vector<8x96xf32>
    %17 = vector.broadcast %1 : vector<1x96xf32> to vector<8x96xf32>
    %18 = arith.addf %16, %17 : vector<8x96xf32>
    %cst_8 = arith.constant 0.000000e+00 : f32
    %19 = vector.broadcast %cst_8 : f32 to vector<1x32xf32>
    %20 = vector.extract_strided_slice %18 {offsets = [0, 0], sizes = [1, 96], strides = [1, 1]} : vector<8x96xf32> to vector<1x96xf32>
    %cst_9 = arith.constant dense<0.000000e+00> : vector<1x96xf32>
    %21 = tpu.matmul %19, %7, %cst_9 {dimension_numbers = #tpu.dot_dimension_numbers<[1], [0], [0], [1], [0, 0, 1, 1], [], []>} : vector<1x32xf32>, vector<32x96xf32>, vector<1x96xf32> -> vector<1x96xf32>
    %22 = vector.extract_strided_slice %20 {offsets = [0, 0], sizes = [1, 64], strides = [1, 1]} : vector<1x96xf32> to vector<1x64xf32>
    %23 = vector.extract_strided_slice %21 {offsets = [0, 0], sizes = [1, 64], strides = [1, 1]} : vector<1x96xf32> to vector<1x64xf32>
    %24 = arith.addf %22, %23 : vector<1x64xf32>
    %25 = vector.extract_strided_slice %24 {offsets = [0, 0], sizes = [1, 32], strides = [1, 1]} : vector<1x64xf32> to vector<1x32xf32>
    %26 = arith.negf %25 : vector<1x32xf32>
    %27 = math.exp %26 : vector<1x32xf32>
    %cst_10 = arith.constant 1.000000e+00 : f32
    %28 = vector.broadcast %cst_10 : f32 to vector<1x32xf32>
    %29 = arith.addf %28, %27 : vector<1x32xf32>
    %30 = arith.divf %28, %29 : vector<1x32xf32>
    %31 = vector.extract_strided_slice %24 {offsets = [0, 32], sizes = [1, 32], strides = [1, 1]} : vector<1x64xf32> to vector<1x32xf32>
    %32 = arith.negf %31 : vector<1x32xf32>
    %33 = math.exp %32 : vector<1x32xf32>
    %cst_11 = arith.constant 1.000000e+00 : f32
    %34 = vector.broadcast %cst_11 : f32 to vector<1x32xf32>
    %35 = arith.addf %34, %33 : vector<1x32xf32>
    %36 = arith.divf %34, %35 : vector<1x32xf32>
    %37 = vector.extract_strided_slice %20 {offsets = [0, 64], sizes = [1, 32], strides = [1, 1]} : vector<1x96xf32> to vector<1x32xf32>
    %38 = vector.extract_strided_slice %21 {offsets = [0, 64], sizes = [1, 32], strides = [1, 1]} : vector<1x96xf32> to vector<1x32xf32>
    %39 = arith.addf %38, %2 : vector<1x32xf32>
    %40 = arith.mulf %30, %39 : vector<1x32xf32>
    %41 = arith.addf %37, %40 : vector<1x32xf32>
    %42 = math.tanh %41 : vector<1x32xf32>
    %cst_12 = arith.constant 1.000000e+00 : f32
    %43 = vector.broadcast %cst_12 : f32 to vector<1x32xf32>
    %44 = arith.subf %43, %36 : vector<1x32xf32>
    %45 = arith.mulf %44, %42 : vector<1x32xf32>
    %46 = arith.mulf %36, %19 : vector<1x32xf32>
    %47 = arith.addf %45, %46 : vector<1x32xf32>
    %48 = vector.extract_strided_slice %18 {offsets = [1, 0], sizes = [1, 96], strides = [1, 1]} : vector<8x96xf32> to vector<1x96xf32>
    %cst_13 = arith.constant dense<0.000000e+00> : vector<1x96xf32>
    %49 = tpu.matmul %47, %7, %cst_13 {dimension_numbers = #tpu.dot_dimension_numbers<[1], [0], [0], [1], [0, 0, 1, 1], [], []>} : vector<1x32xf32>, vector<32x96xf32>, vector<1x96xf32> -> vector<1x96xf32>
    %50 = vector.extract_strided_slice %48 {offsets = [0, 0], sizes = [1, 64], strides = [1, 1]} : vector<1x96xf32> to vector<1x64xf32>
    %51 = vector.extract_strided_slice %49 {offsets = [0, 0], sizes = [1, 64], strides = [1, 1]} : vector<1x96xf32> to vector<1x64xf32>
    %52 = arith.addf %50, %51 : vector<1x64xf32>
    %53 = vector.extract_strided_slice %52 {offsets = [0, 0], sizes = [1, 32], strides = [1, 1]} : vector<1x64xf32> to vector<1x32xf32>
    %54 = arith.negf %53 : vector<1x32xf32>
    %55 = math.exp %54 : vector<1x32xf32>
    %cst_14 = arith.constant 1.000000e+00 : f32
    %56 = vector.broadcast %cst_14 : f32 to vector<1x32xf32>
    %57 = arith.addf %56, %55 : vector<1x32xf32>
    %58 = arith.divf %56, %57 : vector<1x32xf32>
    %59 = vector.extract_strided_slice %52 {offsets = [0, 32], sizes = [1, 32], strides = [1, 1]} : vector<1x64xf32> to vector<1x32xf32>
    %60 = arith.negf %59 : vector<1x32xf32>
    %61 = math.exp %60 : vector<1x32xf32>
    %cst_15 = arith.constant 1.000000e+00 : f32
    %62 = vector.broadcast %cst_15 : f32 to vector<1x32xf32>
    %63 = arith.addf %62, %61 : vector<1x32xf32>
    %64 = arith.divf %62, %63 : vector<1x32xf32>
    %65 = vector.extract_strided_slice %48 {offsets = [0, 64], sizes = [1, 32], strides = [1, 1]} : vector<1x96xf32> to vector<1x32xf32>
    %66 = vector.extract_strided_slice %49 {offsets = [0, 64], sizes = [1, 32], strides = [1, 1]} : vector<1x96xf32> to vector<1x32xf32>
    %67 = arith.addf %66, %2 : vector<1x32xf32>
    %68 = arith.mulf %58, %67 : vector<1x32xf32>
    %69 = arith.addf %65, %68 : vector<1x32xf32>
    %70 = math.tanh %69 : vector<1x32xf32>
    %cst_16 = arith.constant 1.000000e+00 : f32
    %71 = vector.broadcast %cst_16 : f32 to vector<1x32xf32>
    %72 = arith.subf %71, %64 : vector<1x32xf32>
    %73 = arith.mulf %72, %70 : vector<1x32xf32>
    %74 = arith.mulf %64, %47 : vector<1x32xf32>
    %75 = arith.addf %73, %74 : vector<1x32xf32>
    %76 = vector.extract_strided_slice %18 {offsets = [2, 0], sizes = [1, 96], strides = [1, 1]} : vector<8x96xf32> to vector<1x96xf32>
    %cst_17 = arith.constant dense<0.000000e+00> : vector<1x96xf32>
    %77 = tpu.matmul %75, %7, %cst_17 {dimension_numbers = #tpu.dot_dimension_numbers<[1], [0], [0], [1], [0, 0, 1, 1], [], []>} : vector<1x32xf32>, vector<32x96xf32>, vector<1x96xf32> -> vector<1x96xf32>
    %78 = vector.extract_strided_slice %76 {offsets = [0, 0], sizes = [1, 64], strides = [1, 1]} : vector<1x96xf32> to vector<1x64xf32>
    %79 = vector.extract_strided_slice %77 {offsets = [0, 0], sizes = [1, 64], strides = [1, 1]} : vector<1x96xf32> to vector<1x64xf32>
    %80 = arith.addf %78, %79 : vector<1x64xf32>
    %81 = vector.extract_strided_slice %80 {offsets = [0, 0], sizes = [1, 32], strides = [1, 1]} : vector<1x64xf32> to vector<1x32xf32>
    %82 = arith.negf %81 : vector<1x32xf32>
    %83 = math.exp %82 : vector<1x32xf32>
    %cst_18 = arith.constant 1.000000e+00 : f32
    %84 = vector.broadcast %cst_18 : f32 to vector<1x32xf32>
    %85 = arith.addf %84, %83 : vector<1x32xf32>
    %86 = arith.divf %84, %85 : vector<1x32xf32>
    %87 = vector.extract_strided_slice %80 {offsets = [0, 32], sizes = [1, 32], strides = [1, 1]} : vector<1x64xf32> to vector<1x32xf32>
    %88 = arith.negf %87 : vector<1x32xf32>
    %89 = math.exp %88 : vector<1x32xf32>
    %cst_19 = arith.constant 1.000000e+00 : f32
    %90 = vector.broadcast %cst_19 : f32 to vector<1x32xf32>
    %91 = arith.addf %90, %89 : vector<1x32xf32>
    %92 = arith.divf %90, %91 : vector<1x32xf32>
    %93 = vector.extract_strided_slice %76 {offsets = [0, 64], sizes = [1, 32], strides = [1, 1]} : vector<1x96xf32> to vector<1x32xf32>
    %94 = vector.extract_strided_slice %77 {offsets = [0, 64], sizes = [1, 32], strides = [1, 1]} : vector<1x96xf32> to vector<1x32xf32>
    %95 = arith.addf %94, %2 : vector<1x32xf32>
    %96 = arith.mulf %86, %95 : vector<1x32xf32>
    %97 = arith.addf %93, %96 : vector<1x32xf32>
    %98 = math.tanh %97 : vector<1x32xf32>
    %cst_20 = arith.constant 1.000000e+00 : f32
    %99 = vector.broadcast %cst_20 : f32 to vector<1x32xf32>
    %100 = arith.subf %99, %92 : vector<1x32xf32>
    %101 = arith.mulf %100, %98 : vector<1x32xf32>
    %102 = arith.mulf %92, %75 : vector<1x32xf32>
    %103 = arith.addf %101, %102 : vector<1x32xf32>
    %104 = vector.extract_strided_slice %18 {offsets = [3, 0], sizes = [1, 96], strides = [1, 1]} : vector<8x96xf32> to vector<1x96xf32>
    %cst_21 = arith.constant dense<0.000000e+00> : vector<1x96xf32>
    %105 = tpu.matmul %103, %7, %cst_21 {dimension_numbers = #tpu.dot_dimension_numbers<[1], [0], [0], [1], [0, 0, 1, 1], [], []>} : vector<1x32xf32>, vector<32x96xf32>, vector<1x96xf32> -> vector<1x96xf32>
    %106 = vector.extract_strided_slice %104 {offsets = [0, 0], sizes = [1, 64], strides = [1, 1]} : vector<1x96xf32> to vector<1x64xf32>
    %107 = vector.extract_strided_slice %105 {offsets = [0, 0], sizes = [1, 64], strides = [1, 1]} : vector<1x96xf32> to vector<1x64xf32>
    %108 = arith.addf %106, %107 : vector<1x64xf32>
    %109 = vector.extract_strided_slice %108 {offsets = [0, 0], sizes = [1, 32], strides = [1, 1]} : vector<1x64xf32> to vector<1x32xf32>
    %110 = arith.negf %109 : vector<1x32xf32>
    %111 = math.exp %110 : vector<1x32xf32>
    %cst_22 = arith.constant 1.000000e+00 : f32
    %112 = vector.broadcast %cst_22 : f32 to vector<1x32xf32>
    %113 = arith.addf %112, %111 : vector<1x32xf32>
    %114 = arith.divf %112, %113 : vector<1x32xf32>
    %115 = vector.extract_strided_slice %108 {offsets = [0, 32], sizes = [1, 32], strides = [1, 1]} : vector<1x64xf32> to vector<1x32xf32>
    %116 = arith.negf %115 : vector<1x32xf32>
    %117 = math.exp %116 : vector<1x32xf32>
    %cst_23 = arith.constant 1.000000e+00 : f32
    %118 = vector.broadcast %cst_23 : f32 to vector<1x32xf32>
    %119 = arith.addf %118, %117 : vector<1x32xf32>
    %120 = arith.divf %118, %119 : vector<1x32xf32>
    %121 = vector.extract_strided_slice %104 {offsets = [0, 64], sizes = [1, 32], strides = [1, 1]} : vector<1x96xf32> to vector<1x32xf32>
    %122 = vector.extract_strided_slice %105 {offsets = [0, 64], sizes = [1, 32], strides = [1, 1]} : vector<1x96xf32> to vector<1x32xf32>
    %123 = arith.addf %122, %2 : vector<1x32xf32>
    %124 = arith.mulf %114, %123 : vector<1x32xf32>
    %125 = arith.addf %121, %124 : vector<1x32xf32>
    %126 = math.tanh %125 : vector<1x32xf32>
    %cst_24 = arith.constant 1.000000e+00 : f32
    %127 = vector.broadcast %cst_24 : f32 to vector<1x32xf32>
    %128 = arith.subf %127, %120 : vector<1x32xf32>
    %129 = arith.mulf %128, %126 : vector<1x32xf32>
    %130 = arith.mulf %120, %103 : vector<1x32xf32>
    %131 = arith.addf %129, %130 : vector<1x32xf32>
    %132 = vector.extract_strided_slice %18 {offsets = [4, 0], sizes = [1, 96], strides = [1, 1]} : vector<8x96xf32> to vector<1x96xf32>
    %cst_25 = arith.constant dense<0.000000e+00> : vector<1x96xf32>
    %133 = tpu.matmul %131, %7, %cst_25 {dimension_numbers = #tpu.dot_dimension_numbers<[1], [0], [0], [1], [0, 0, 1, 1], [], []>} : vector<1x32xf32>, vector<32x96xf32>, vector<1x96xf32> -> vector<1x96xf32>
    %134 = vector.extract_strided_slice %132 {offsets = [0, 0], sizes = [1, 64], strides = [1, 1]} : vector<1x96xf32> to vector<1x64xf32>
    %135 = vector.extract_strided_slice %133 {offsets = [0, 0], sizes = [1, 64], strides = [1, 1]} : vector<1x96xf32> to vector<1x64xf32>
    %136 = arith.addf %134, %135 : vector<1x64xf32>
    %137 = vector.extract_strided_slice %136 {offsets = [0, 0], sizes = [1, 32], strides = [1, 1]} : vector<1x64xf32> to vector<1x32xf32>
    %138 = arith.negf %137 : vector<1x32xf32>
    %139 = math.exp %138 : vector<1x32xf32>
    %cst_26 = arith.constant 1.000000e+00 : f32
    %140 = vector.broadcast %cst_26 : f32 to vector<1x32xf32>
    %141 = arith.addf %140, %139 : vector<1x32xf32>
    %142 = arith.divf %140, %141 : vector<1x32xf32>
    %143 = vector.extract_strided_slice %136 {offsets = [0, 32], sizes = [1, 32], strides = [1, 1]} : vector<1x64xf32> to vector<1x32xf32>
    %144 = arith.negf %143 : vector<1x32xf32>
    %145 = math.exp %144 : vector<1x32xf32>
    %cst_27 = arith.constant 1.000000e+00 : f32
    %146 = vector.broadcast %cst_27 : f32 to vector<1x32xf32>
    %147 = arith.addf %146, %145 : vector<1x32xf32>
    %148 = arith.divf %146, %147 : vector<1x32xf32>
    %149 = vector.extract_strided_slice %132 {offsets = [0, 64], sizes = [1, 32], strides = [1, 1]} : vector<1x96xf32> to vector<1x32xf32>
    %150 = vector.extract_strided_slice %133 {offsets = [0, 64], sizes = [1, 32], strides = [1, 1]} : vector<1x96xf32> to vector<1x32xf32>
    %151 = arith.addf %150, %2 : vector<1x32xf32>
    %152 = arith.mulf %142, %151 : vector<1x32xf32>
    %153 = arith.addf %149, %152 : vector<1x32xf32>
    %154 = math.tanh %153 : vector<1x32xf32>
    %cst_28 = arith.constant 1.000000e+00 : f32
    %155 = vector.broadcast %cst_28 : f32 to vector<1x32xf32>
    %156 = arith.subf %155, %148 : vector<1x32xf32>
    %157 = arith.mulf %156, %154 : vector<1x32xf32>
    %158 = arith.mulf %148, %131 : vector<1x32xf32>
    %159 = arith.addf %157, %158 : vector<1x32xf32>
    %160 = vector.extract_strided_slice %18 {offsets = [5, 0], sizes = [1, 96], strides = [1, 1]} : vector<8x96xf32> to vector<1x96xf32>
    %cst_29 = arith.constant dense<0.000000e+00> : vector<1x96xf32>
    %161 = tpu.matmul %159, %7, %cst_29 {dimension_numbers = #tpu.dot_dimension_numbers<[1], [0], [0], [1], [0, 0, 1, 1], [], []>} : vector<1x32xf32>, vector<32x96xf32>, vector<1x96xf32> -> vector<1x96xf32>
    %162 = vector.extract_strided_slice %160 {offsets = [0, 0], sizes = [1, 64], strides = [1, 1]} : vector<1x96xf32> to vector<1x64xf32>
    %163 = vector.extract_strided_slice %161 {offsets = [0, 0], sizes = [1, 64], strides = [1, 1]} : vector<1x96xf32> to vector<1x64xf32>
    %164 = arith.addf %162, %163 : vector<1x64xf32>
    %165 = vector.extract_strided_slice %164 {offsets = [0, 0], sizes = [1, 32], strides = [1, 1]} : vector<1x64xf32> to vector<1x32xf32>
    %166 = arith.negf %165 : vector<1x32xf32>
    %167 = math.exp %166 : vector<1x32xf32>
    %cst_30 = arith.constant 1.000000e+00 : f32
    %168 = vector.broadcast %cst_30 : f32 to vector<1x32xf32>
    %169 = arith.addf %168, %167 : vector<1x32xf32>
    %170 = arith.divf %168, %169 : vector<1x32xf32>
    %171 = vector.extract_strided_slice %164 {offsets = [0, 32], sizes = [1, 32], strides = [1, 1]} : vector<1x64xf32> to vector<1x32xf32>
    %172 = arith.negf %171 : vector<1x32xf32>
    %173 = math.exp %172 : vector<1x32xf32>
    %cst_31 = arith.constant 1.000000e+00 : f32
    %174 = vector.broadcast %cst_31 : f32 to vector<1x32xf32>
    %175 = arith.addf %174, %173 : vector<1x32xf32>
    %176 = arith.divf %174, %175 : vector<1x32xf32>
    %177 = vector.extract_strided_slice %160 {offsets = [0, 64], sizes = [1, 32], strides = [1, 1]} : vector<1x96xf32> to vector<1x32xf32>
    %178 = vector.extract_strided_slice %161 {offsets = [0, 64], sizes = [1, 32], strides = [1, 1]} : vector<1x96xf32> to vector<1x32xf32>
    %179 = arith.addf %178, %2 : vector<1x32xf32>
    %180 = arith.mulf %170, %179 : vector<1x32xf32>
    %181 = arith.addf %177, %180 : vector<1x32xf32>
    %182 = math.tanh %181 : vector<1x32xf32>
    %cst_32 = arith.constant 1.000000e+00 : f32
    %183 = vector.broadcast %cst_32 : f32 to vector<1x32xf32>
    %184 = arith.subf %183, %176 : vector<1x32xf32>
    %185 = arith.mulf %184, %182 : vector<1x32xf32>
    %186 = arith.mulf %176, %159 : vector<1x32xf32>
    %187 = arith.addf %185, %186 : vector<1x32xf32>
    %188 = vector.extract_strided_slice %18 {offsets = [6, 0], sizes = [1, 96], strides = [1, 1]} : vector<8x96xf32> to vector<1x96xf32>
    %cst_33 = arith.constant dense<0.000000e+00> : vector<1x96xf32>
    %189 = tpu.matmul %187, %7, %cst_33 {dimension_numbers = #tpu.dot_dimension_numbers<[1], [0], [0], [1], [0, 0, 1, 1], [], []>} : vector<1x32xf32>, vector<32x96xf32>, vector<1x96xf32> -> vector<1x96xf32>
    %190 = vector.extract_strided_slice %188 {offsets = [0, 0], sizes = [1, 64], strides = [1, 1]} : vector<1x96xf32> to vector<1x64xf32>
    %191 = vector.extract_strided_slice %189 {offsets = [0, 0], sizes = [1, 64], strides = [1, 1]} : vector<1x96xf32> to vector<1x64xf32>
    %192 = arith.addf %190, %191 : vector<1x64xf32>
    %193 = vector.extract_strided_slice %192 {offsets = [0, 0], sizes = [1, 32], strides = [1, 1]} : vector<1x64xf32> to vector<1x32xf32>
    %194 = arith.negf %193 : vector<1x32xf32>
    %195 = math.exp %194 : vector<1x32xf32>
    %cst_34 = arith.constant 1.000000e+00 : f32
    %196 = vector.broadcast %cst_34 : f32 to vector<1x32xf32>
    %197 = arith.addf %196, %195 : vector<1x32xf32>
    %198 = arith.divf %196, %197 : vector<1x32xf32>
    %199 = vector.extract_strided_slice %192 {offsets = [0, 32], sizes = [1, 32], strides = [1, 1]} : vector<1x64xf32> to vector<1x32xf32>
    %200 = arith.negf %199 : vector<1x32xf32>
    %201 = math.exp %200 : vector<1x32xf32>
    %cst_35 = arith.constant 1.000000e+00 : f32
    %202 = vector.broadcast %cst_35 : f32 to vector<1x32xf32>
    %203 = arith.addf %202, %201 : vector<1x32xf32>
    %204 = arith.divf %202, %203 : vector<1x32xf32>
    %205 = vector.extract_strided_slice %188 {offsets = [0, 64], sizes = [1, 32], strides = [1, 1]} : vector<1x96xf32> to vector<1x32xf32>
    %206 = vector.extract_strided_slice %189 {offsets = [0, 64], sizes = [1, 32], strides = [1, 1]} : vector<1x96xf32> to vector<1x32xf32>
    %207 = arith.addf %206, %2 : vector<1x32xf32>
    %208 = arith.mulf %198, %207 : vector<1x32xf32>
    %209 = arith.addf %205, %208 : vector<1x32xf32>
    %210 = math.tanh %209 : vector<1x32xf32>
    %cst_36 = arith.constant 1.000000e+00 : f32
    %211 = vector.broadcast %cst_36 : f32 to vector<1x32xf32>
    %212 = arith.subf %211, %204 : vector<1x32xf32>
    %213 = arith.mulf %212, %210 : vector<1x32xf32>
    %214 = arith.mulf %204, %187 : vector<1x32xf32>
    %215 = arith.addf %213, %214 : vector<1x32xf32>
    %216 = vector.extract_strided_slice %18 {offsets = [7, 0], sizes = [1, 96], strides = [1, 1]} : vector<8x96xf32> to vector<1x96xf32>
    %cst_37 = arith.constant dense<0.000000e+00> : vector<1x96xf32>
    %217 = tpu.matmul %215, %7, %cst_37 {dimension_numbers = #tpu.dot_dimension_numbers<[1], [0], [0], [1], [0, 0, 1, 1], [], []>} : vector<1x32xf32>, vector<32x96xf32>, vector<1x96xf32> -> vector<1x96xf32>
    %218 = vector.extract_strided_slice %216 {offsets = [0, 0], sizes = [1, 64], strides = [1, 1]} : vector<1x96xf32> to vector<1x64xf32>
    %219 = vector.extract_strided_slice %217 {offsets = [0, 0], sizes = [1, 64], strides = [1, 1]} : vector<1x96xf32> to vector<1x64xf32>
    %220 = arith.addf %218, %219 : vector<1x64xf32>
    %221 = vector.extract_strided_slice %220 {offsets = [0, 0], sizes = [1, 32], strides = [1, 1]} : vector<1x64xf32> to vector<1x32xf32>
    %222 = arith.negf %221 : vector<1x32xf32>
    %223 = math.exp %222 : vector<1x32xf32>
    %cst_38 = arith.constant 1.000000e+00 : f32
    %224 = vector.broadcast %cst_38 : f32 to vector<1x32xf32>
    %225 = arith.addf %224, %223 : vector<1x32xf32>
    %226 = arith.divf %224, %225 : vector<1x32xf32>
    %227 = vector.extract_strided_slice %220 {offsets = [0, 32], sizes = [1, 32], strides = [1, 1]} : vector<1x64xf32> to vector<1x32xf32>
    %228 = arith.negf %227 : vector<1x32xf32>
    %229 = math.exp %228 : vector<1x32xf32>
    %cst_39 = arith.constant 1.000000e+00 : f32
    %230 = vector.broadcast %cst_39 : f32 to vector<1x32xf32>
    %231 = arith.addf %230, %229 : vector<1x32xf32>
    %232 = arith.divf %230, %231 : vector<1x32xf32>
    %233 = vector.extract_strided_slice %216 {offsets = [0, 64], sizes = [1, 32], strides = [1, 1]} : vector<1x96xf32> to vector<1x32xf32>
    %234 = vector.extract_strided_slice %217 {offsets = [0, 64], sizes = [1, 32], strides = [1, 1]} : vector<1x96xf32> to vector<1x32xf32>
    %235 = arith.addf %234, %2 : vector<1x32xf32>
    %236 = arith.mulf %226, %235 : vector<1x32xf32>
    %237 = arith.addf %233, %236 : vector<1x32xf32>
    %238 = math.tanh %237 : vector<1x32xf32>
    %cst_40 = arith.constant 1.000000e+00 : f32
    %239 = vector.broadcast %cst_40 : f32 to vector<1x32xf32>
    %240 = arith.subf %239, %232 : vector<1x32xf32>
    %241 = arith.mulf %240, %238 : vector<1x32xf32>
    %242 = arith.mulf %232, %215 : vector<1x32xf32>
    %243 = arith.addf %241, %242 : vector<1x32xf32>
    %244 = tpu.concatenate %47, %75, %103, %131, %159, %187, %215, %243 in 1 : vector<1x32xf32>, vector<1x32xf32>, vector<1x32xf32>, vector<1x32xf32>, vector<1x32xf32>, vector<1x32xf32>, vector<1x32xf32>, vector<1x32xf32> -> vector<1x256xf32>
    %245 = vector.shape_cast %244 : vector<1x256xf32> to vector<1x256xf32>
    %246 = vector.broadcast %245 : vector<1x256xf32> to vector<4x256xf32>
    %c0_41 = arith.constant 0 : index
    %c0_42 = arith.constant 0 : index
    %247 = vector.load %arg4[%c0_41, %c0_42] : memref<4x256xf32, #tpu.memory_space<vmem>>, vector<4x256xf32>
    tpu.vector_store %arg4[%c0_41, %c0_42], %246 {strides = array<i32>} : memref<4x256xf32, #tpu.memory_space<vmem>>, vector<4x256xf32>,
    %248 = arith.mulf %244, %3 : vector<1x256xf32>
    %cst_43 = arith.constant dense<0.000000e+00> : vector<1xf32>
    %249 = vector.multi_reduction <add>, %248, %cst_43 [1] : vector<1x256xf32> to vector<1xf32>
    %250 = vector.shape_cast %249 : vector<1xf32> to vector<1x1xf32>
    %251 = arith.addf %250, %4 : vector<1x1xf32>
    %252 = arith.negf %251 : vector<1x1xf32>
    %253 = math.exp %252 : vector<1x1xf32>
    %cst_44 = arith.constant 1.000000e+00 : f32
    %254 = vector.broadcast %cst_44 : f32 to vector<1x1xf32>
    %255 = arith.addf %254, %253 : vector<1x1xf32>
    %256 = arith.divf %254, %255 : vector<1x1xf32>
    %257 = vector.shape_cast %256 : vector<1x1xf32> to vector<1x1xf32>
    %258 = vector.broadcast %257 : vector<1x1xf32> to vector<4x1xf32>
    %c0_45 = arith.constant 0 : index
    %c0_46 = arith.constant 0 : index
    %259 = vector.load %arg5[%c0_45, %c0_46] : memref<4x1xf32, #tpu.memory_space<vmem>>, vector<4x1xf32>
    tpu.vector_store %arg5[%c0_45, %c0_46], %258 {strides = array<i32>} : memref<4x1xf32, #tpu.memory_space<vmem>>, vector<4x1xf32>,
    return
  }
}

</mosaic_0001>

<llo_original>
// kernel: discriminator_forward.1
$region0: #{discriminator_forward.1}
  #allocation0 [shape = 'u32[]', space=smem, size = 0x4, offset = 0x4, fixed_abs, tag = 'smem constant byte address 0x4 - core index']
  #allocation1 [shape = 'u32[144,128]{1,0:T(1,128)}', space=vmem, size = 0x12000, scoped, tag = 'internal scratch']
  %s0 = inlined_call_operand.vmem [shape: s32[8,1], index: 0, kind: input, shape index: {}]
  %s1 = inlined_call_operand.vmem [shape: f32[16,32], index: 1, kind: input, shape index: {}]
  %s2 = inlined_call_operand.vmem [shape: f32[32,192], index: 2, kind: input, shape index: {}]
  %s3 = inlined_call_operand.vmem [shape: f32[1,385], index: 3, kind: input, shape index: {}]
  %s4 = inlined_call_operand.hbm [shape: f32[4,256], index: 4, kind: output, shape index: {0}]
  %s5 = inlined_call_operand.vmem [shape: f32[4,1], index: 5, kind: output, shape index: {1}]
  %6 = xla_tuple %s4, %s5
  %s7 = sld [smem:[#allocation0]]
  $region34: #{discriminator_forward.1} parent=0
    _
  %s9 = ssub.s32 1, %s7
  %s10 = scalar_select 0, %s9, %s7
  $region1: #{discriminator_forward.1} parent=0
    #allocation2 [shape = 'u8[4096]{0}', space=vmem, size = 0x1000, scoped, tag = 'output window, operand 0, single buffered']
    #allocation3 [shape = 's32[1]{0}', space=sflag, size = 0x4, scoped, tag = 'scoped memory for discriminator_forward.1']
    %11 = vsyncpa [#allocation3], 0
    // Predicated region
    $region2: #{discriminator_forward.1} parent=1 // pred_check
      _
    $region3: #{discriminator_forward.1} parent=1 // pred_check_branch
      %13 = sbr.rel (0) target = $region5
    $region4: #{discriminator_forward.1} parent=1 // pred_region
      _
    $region5: #{discriminator_forward.1} parent=1 // pred_fallthru
      _
    // Predicated region
    $region6: #{discriminator_forward.1} parent=1 // pred_check
      _
    $region7: #{discriminator_forward.1} parent=1 // pred_check_branch
      %15 = sbr.rel (0) target = $region9
    $region8: #{discriminator_forward.1} parent=1 // pred_region
      _
    $region9: #{discriminator_forward.1} parent=1 // pred_fallthru
      _
    // Predicated region
    $region10: #{discriminator_forward.1} parent=1 // pred_check
      _
    $region11: #{discriminator_forward.1} parent=1 // pred_check_branch
      %17 = sbr.rel (0) target = $region13
    $region12: #{discriminator_forward.1} parent=1 // pred_region
      _
    $region13: #{discriminator_forward.1} parent=1 // pred_fallthru
      _
    // Predicated region
    $region14: #{discriminator_forward.1} parent=1 // pred_check
      _
    $region15: #{discriminator_forward.1} parent=1 // pred_check_branch
      %19 = sbr.rel (0) target = $region17
    $region16: #{discriminator_forward.1} parent=1 // pred_region
      _
    $region17: #{discriminator_forward.1} parent=1 // pred_fallthru
      _
    %v20 = vld [vmem:[%s3] sm:$0xf]
    %v21 = vld [vmem:[%s2] sm:$0xff]
    %v22 = vld [vmem:[%s2 + $0x8] sm:$0xff]
    %v23 = vld [vmem:[%s2 + $0x10] sm:$0xff]
    %v24 = vld [vmem:[%s2 + $0x18] sm:$0xff]
    %v25 = vld [vmem:[%s2 + $0x20] sm:$0xff]
    %v26 = vld [vmem:[%s2 + $0x28] sm:$0xff]
    %v27 = vld [vmem:[%s2 + $0x30] sm:$0xff]
    %v28 = vld [vmem:[%s2 + $0x38] sm:$0xff]
    %v29 = vld [vmem:[%s0] sm:$0xff]
    %v30 = vlaneseq
    %v31 = vand.u32 %v30, 127
    %32 = vset.pattern.permute.xlu0 0
    %33 = vperm.xlu0 %32, %v29
    %v34 = vpop.permute.xlu0 %33
    %vm35 = vcmp.eq.s32.totalorder %v34, %v31
    %v36 = vsel %vm35, 1, 0
    %v37 = vcvt.s32.f32 %v36
    %v38 = vld [vmem:[%s1] sm:$0xff]
    %v39 = vld [vmem:[%s1 + $0x8] sm:$0xff]
    %vm40 = vcmask 130048
    %v42 = vsel %vm40, %v37, 0
    %44 = vmatprep.subr.mxu0 0.0
    %45 = vmatpush1.msra.mxu0 %v38
    %46 = vmatprep.subr.mxu0 0.0
    %47 = vmatpush1.msra.mxu0 %v39
    %48 = vmatprep.subr.mxu0 0.0
    %49 = vmatpush1.msra.mxu0 0.0
    %50 = vmatprep.subr.mxu0 0.0
    %51 = vmatpush1.msra.mxu0 0.0
    %52 = vmatprep.subr.mxu0 0.0
    %53 = vmatpush1.msra.mxu0 0.0
    %54 = vmatprep.subr.mxu0 0.0
    %55 = vmatpush1.msra.mxu0 0.0
    %56 = vmatprep.subr.mxu0 0.0
    %57 = vmatpush1.msra.mxu0 0.0
    %58 = vmatprep.subr.mxu0 0.0
    %59 = vmatpush1.msra.mxu0 0.0
    %60 = vmatprep.subr.mxu0 0.0
    %61 = vmatpush1.msra.mxu0 0.0
    %62 = vmatprep.subr.mxu0 0.0
    %63 = vmatpush1.msra.mxu0 0.0
    %64 = vmatprep.subr.mxu0 0.0
    %65 = vmatpush1.msra.mxu0 0.0
    %66 = vmatprep.subr.mxu0 0.0
    %67 = vmatpush1.msra.mxu0 0.0
    %68 = vmatprep.subr.mxu0 0.0
    %69 = vmatpush1.msra.mxu0 0.0
    %70 = vmatprep.subr.mxu0 0.0
    %71 = vmatpush1.msra.mxu0 0.0
    %72 = vmatprep.subr.mxu0 0.0
    %73 = vmatpush1.msra.mxu0 0.0
    %74 = vmatprep.subr.mxu0 0.0
    %75 = vmatpush1.msra.mxu0 0.0
    %76 = vmatprep.subr.mxu0 0.0
    %77 = vmatpush1.msra.mxu0 0.0
    %78 = vmatprep.subr.mxu0 0.0
    %79 = vmatpush1.msra.mxu0 0.0
    %80 = vmatprep.subr.mxu0 0.0
    %81 = vmatpush1.msra.mxu0 0.0
    %82 = vmatprep.subr.mxu0 0.0
    %83 = vmatpush1.msra.mxu0 0.0
    %84 = vmatprep.subr.mxu0 0.0
    %85 = vmatpush1.msra.mxu0 0.0
    %86 = vmatprep.subr.mxu0 0.0
    %87 = vmatpush1.msra.mxu0 0.0
    %88 = vmatprep.subr.mxu0 0.0
    %89 = vmatpush1.msra.mxu0 0.0
    %90 = vmatprep.subr.mxu0 0.0
    %91 = vmatpush1.msra.mxu0 0.0
    %92 = vmatprep.subr.mxu0 0.0
    %93 = vmatpush1.msra.mxu0 0.0
    %94 = vmatprep.subr.mxu0 0.0
    %95 = vmatpush1.msra.mxu0 0.0
    %96 = vmatprep.subr.mxu0 0.0
    %97 = vmatpush1.msra.mxu0 0.0
    %98 = vmatprep.subr.mxu0 0.0
    %99 = vmatpush1.msra.mxu0 0.0
    %100 = vmatprep.subr.mxu0 0.0
    %101 = vmatpush1.msra.mxu0 0.0
    %102 = vmatprep.subr.mxu0 0.0
    %103 = vmatpush1.msra.mxu0 0.0
    %104 = vmatprep.subr.mxu0 0.0
    %105 = vmatpush1.msra.mxu0 0.0
    %106 = vmatprep.subr.mxu0 0.0
    %107 = vmatpush1.msra.mxu0 0.0
    %108 = vmatprep.mubr.f32.mxu0 0.0
    %109 = vmatmul.mubr.f32.gmra.mrb[0].mxu0 %v42
    %v110 = vpop.f32.mrb[0].mxu0
    %v111 = vadd.f32 0.0, %v110
    %v112 = vpop.f32.mrb[0].mxu0
    %113 = vdwg.mxu0
    %v115 = vlaneseq
    %v116 = vshrl.u32 %v115, 7
    %v117 = vsub.s32 0, %v116
    %v118 = vrot.slane %v20, %v117
    %vm120 = vcmask 261120
    %v122 = vsel %vm120, %v111, 0
    %124 = vmatprep.subr.mxu0 0.0
    %125 = vmatpush1.msra.mxu0 %v21
    %126 = vmatprep.subr.mxu0 0.0
    %127 = vmatpush1.msra.mxu0 %v23
    %128 = vmatprep.subr.mxu0 0.0
    %129 = vmatpush1.msra.mxu0 %v25
    %130 = vmatprep.subr.mxu0 0.0
    %131 = vmatpush1.msra.mxu0 %v27
    %132 = vmatprep.subr.mxu0 0.0
    %133 = vmatpush1.msra.mxu0 0.0
    %134 = vmatprep.subr.mxu0 0.0
    %135 = vmatpush1.msra.mxu0 0.0
    %136 = vmatprep.subr.mxu0 0.0
    %137 = vmatpush1.msra.mxu0 0.0
    %138 = vmatprep.subr.mxu0 0.0
    %139 = vmatpush1.msra.mxu0 0.0
    %140 = vmatprep.subr.mxu0 0.0
    %141 = vmatpush1.msra.mxu0 0.0
    %142 = vmatprep.subr.mxu0 0.0
    %143 = vmatpush1.msra.mxu0 0.0
    %144 = vmatprep.subr.mxu0 0.0
    %145 = vmatpush1.msra.mxu0 0.0
    %146 = vmatprep.subr.mxu0 0.0
    %147 = vmatpush1.msra.mxu0 0.0
    %148 = vmatprep.subr.mxu0 0.0
    %149 = vmatpush1.msra.mxu0 0.0
    %150 = vmatprep.subr.mxu0 0.0
    %151 = vmatpush1.msra.mxu0 0.0
    %152 = vmatprep.subr.mxu0 0.0
    %153 = vmatpush1.msra.mxu0 0.0
    %154 = vmatprep.subr.mxu0 0.0
    %155 = vmatpush1.msra.mxu0 0.0
    %156 = vmatprep.subr.mxu0 0.0
    %157 = vmatpush1.msra.mxu0 0.0
    %158 = vmatprep.subr.mxu0 0.0
    %159 = vmatpush1.msra.mxu0 0.0
    %160 = vmatprep.subr.mxu0 0.0
    %161 = vmatpush1.msra.mxu0 0.0
    %162 = vmatprep.subr.mxu0 0.0
    %163 = vmatpush1.msra.mxu0 0.0
    %164 = vmatprep.subr.mxu0 0.0
    %165 = vmatpush1.msra.mxu0 0.0
    %166 = vmatprep.subr.mxu0 0.0
    %167 = vmatpush1.msra.mxu0 0.0
    %168 = vmatprep.subr.mxu0 0.0
    %169 = vmatpush1.msra.mxu0 0.0
    %170 = vmatprep.subr.mxu0 0.0
    %171 = vmatpush1.msra.mxu0 0.0
    %172 = vmatprep.subr.mxu0 0.0
    %173 = vmatpush1.msra.mxu0 0.0
    %174 = vmatprep.subr.mxu0 0.0
    %175 = vmatpush1.msra.mxu0 0.0
    %176 = vmatprep.subr.mxu0 0.0
    %177 = vmatpush1.msra.mxu0 0.0
    %178 = vmatprep.subr.mxu0 0.0
    %179 = vmatpush1.msra.mxu0 0.0
    %180 = vmatprep.subr.mxu0 0.0
    %181 = vmatpush1.msra.mxu0 0.0
    %182 = vmatprep.subr.mxu0 0.0
    %183 = vmatpush1.msra.mxu0 0.0
    %184 = vmatprep.subr.mxu0 0.0
    %185 = vmatpush1.msra.mxu0 0.0
    %186 = vmatprep.subr.mxu0 0.0
    %187 = vmatpush1.msra.mxu0 0.0
    %188 = vmatprep.mubr.f32.mxu0 0.0
    %189 = vmatmul.mubr.f32.gmra.mrb[0].mxu0 %v122
    %v190 = vpop.f32.mrb[0].mxu0
    %v191 = vadd.f32 %v118, %v190
    %v192 = vpop.f32.mrb[0].mxu0
    %193 = vdwg.mxu0
    %202 = vrot.lane.b32.xlu0 %v21, 32
    %v203 = vpop.permute.xlu0 %202
    %204 = vrot.lane.b32.xlu0 %v22, 32
    %v205 = vpop.permute.xlu0 %204
    %206 = vrot.lane.b32.xlu0 %v23, 32
    %v207 = vpop.permute.xlu0 %206
    %208 = vrot.lane.b32.xlu0 %v24, 32
    %v209 = vpop.permute.xlu0 %208
    %210 = vrot.lane.b32.xlu0 %v25, 32
    %v211 = vpop.permute.xlu0 %210
    %212 = vrot.lane.b32.xlu0 %v26, 32
    %v213 = vpop.permute.xlu0 %212
    %214 = vrot.lane.b32.xlu0 %v27, 32
    %v215 = vpop.permute.xlu0 %214
    %216 = vrot.lane.b32.xlu0 %v28, 32
    %v217 = vpop.permute.xlu0 %216
    %v218 = vsel %vm120, %v203, %v205
    %v219 = vsel %vm120, %v207, %v209
    %v220 = vsel %vm120, %v211, %v213
    %v221 = vsel %vm120, %v215, %v217
    %v227 = vsel %vm120, 0.0, 0
    %229 = vmatprep.subr.mxu0 0.0
    %230 = vmatpush1.msra.mxu0 %v218
    %231 = vmatprep.subr.mxu0 0.0
    %232 = vmatpush1.msra.mxu0 %v219
    %233 = vmatprep.subr.mxu0 0.0
    %234 = vmatpush1.msra.mxu0 %v220
    %235 = vmatprep.subr.mxu0 0.0
    %236 = vmatpush1.msra.mxu0 %v221
    %237 = vmatprep.subr.mxu0 0.0
    %238 = vmatpush1.msra.mxu0 0.0
    %239 = vmatprep.subr.mxu0 0.0
    %240 = vmatpush1.msra.mxu0 0.0
    %241 = vmatprep.subr.mxu0 0.0
    %242 = vmatpush1.msra.mxu0 0.0
    %243 = vmatprep.subr.mxu0 0.0
    %244 = vmatpush1.msra.mxu0 0.0
    %245 = vmatprep.subr.mxu0 0.0
    %246 = vmatpush1.msra.mxu0 0.0
    %247 = vmatprep.subr.mxu0 0.0
    %248 = vmatpush1.msra.mxu0 0.0
    %249 = vmatprep.subr.mxu0 0.0
    %250 = vmatpush1.msra.mxu0 0.0
    %251 = vmatprep.subr.mxu0 0.0
    %252 = vmatpush1.msra.mxu0 0.0
    %253 = vmatprep.subr.mxu0 0.0
    %254 = vmatpush1.msra.mxu0 0.0
    %255 = vmatprep.subr.mxu0 0.0
    %256 = vmatpush1.msra.mxu0 0.0
    %257 = vmatprep.subr.mxu0 0.0
    %258 = vmatpush1.msra.mxu0 0.0
    %259 = vmatprep.subr.mxu0 0.0
    %260 = vmatpush1.msra.mxu0 0.0
    %261 = vmatprep.subr.mxu0 0.0
    %262 = vmatpush1.msra.mxu0 0.0
    %263 = vmatprep.subr.mxu0 0.0
    %264 = vmatpush1.msra.mxu0 0.0
    %265 = vmatprep.subr.mxu0 0.0
    %266 = vmatpush1.msra.mxu0 0.0
    %267 = vmatprep.subr.mxu0 0.0
    %268 = vmatpush1.msra.mxu0 0.0
    %269 = vmatprep.subr.mxu0 0.0
    %270 = vmatpush1.msra.mxu0 0.0
    %271 = vmatprep.subr.mxu0 0.0
    %272 = vmatpush1.msra.mxu0 0.0
    %273 = vmatprep.subr.mxu0 0.0
    %274 = vmatpush1.msra.mxu0 0.0
    %275 = vmatprep.subr.mxu0 0.0
    %276 = vmatpush1.msra.mxu0 0.0
    %277 = vmatprep.subr.mxu0 0.0
    %278 = vmatpush1.msra.mxu0 0.0
    %279 = vmatprep.subr.mxu0 0.0
    %280 = vmatpush1.msra.mxu0 0.0
    %281 = vmatprep.subr.mxu0 0.0
    %282 = vmatpush1.msra.mxu0 0.0
    %283 = vmatprep.subr.mxu0 0.0
    %284 = vmatpush1.msra.mxu0 0.0
    %285 = vmatprep.subr.mxu0 0.0
    %286 = vmatpush1.msra.mxu0 0.0
    %287 = vmatprep.subr.mxu0 0.0
    %288 = vmatpush1.msra.mxu0 0.0
    %289 = vmatprep.subr.mxu0 0.0
    %290 = vmatpush1.msra.mxu0 0.0
    %291 = vmatprep.subr.mxu0 0.0
    %292 = vmatpush1.msra.mxu0 0.0
    %293 = vmatprep.mubr.f32.mxu0 0.0
    %294 = vmatmul.mubr.f32.gmra.mrb[0].mxu0 %v227
    %v295 = vpop.f32.mrb[0].mxu0
    %v296 = vadd.f32 0.0, %v295
    %v297 = vpop.f32.mrb[0].mxu0
    %298 = vdwg.mxu0
    %v299 = vadd.f32 %v191, %v296
    %v300 = vxor.u32 %v299, 2147483648
    %v301 = vmul.f32 %v300, 1.442695
    %v302 = vpow.pop %v301
    %v303 = vadd.f32 %v302, 1.0
    %v304 = vrcp.pop %v303
    %v305 = vmul.f32 1.0, %v304
    %306 = vrot.lane.b32.xlu0 %v118, 96
    %v307 = vpop.permute.xlu0 %306
    %v309 = vadd.f32 %v296, %v307
    %311 = vrot.lane.b32.xlu0 %v309, 64
    %v312 = vpop.permute.xlu0 %311
    %v314 = vmul.f32 %v305, %v312
    %316 = vrot.lane.b32.xlu0 %v314, 64
    %v317 = vpop.permute.xlu0 %316
    %v319 = vadd.f32 %v191, %v317
    %v320 = vtanh.pop %v319
    %v321 = vsub.f32 1.0, %v305
    %323 = vrot.lane.b32.xlu0 %v320, 96
    %v324 = vpop.permute.xlu0 %323
    %v326 = vmul.f32 %v321, %v324
    %v327 = vmul.f32 %v305, 0.0
    %v328 = vadd.f32 %v326, %v327
    %330 = vrot.lane.b32.xlu0 %v328, 96
    %v331 = vpop.permute.xlu0 %330
    %v332 = vsel %vm120, %v331, 0
    %334 = vmatprep.subr.mxu0 0.0
    %335 = vmatpush1.msra.mxu0 %v218
    %336 = vmatprep.subr.mxu0 0.0
    %337 = vmatpush1.msra.mxu0 %v219
    %338 = vmatprep.subr.mxu0 0.0
    %339 = vmatpush1.msra.mxu0 %v220
    %340 = vmatprep.subr.mxu0 0.0
    %341 = vmatpush1.msra.mxu0 %v221
    %342 = vmatprep.subr.mxu0 0.0
    %343 = vmatpush1.msra.mxu0 0.0
    %344 = vmatprep.subr.mxu0 0.0
    %345 = vmatpush1.msra.mxu0 0.0
    %346 = vmatprep.subr.mxu0 0.0
    %347 = vmatpush1.msra.mxu0 0.0
    %348 = vmatprep.subr.mxu0 0.0
    %349 = vmatpush1.msra.mxu0 0.0
    %350 = vmatprep.subr.mxu0 0.0
    %351 = vmatpush1.msra.mxu0 0.0
    %352 = vmatprep.subr.mxu0 0.0
    %353 = vmatpush1.msra.mxu0 0.0
    %354 = vmatprep.subr.mxu0 0.0
    %355 = vmatpush1.msra.mxu0 0.0
    %356 = vmatprep.subr.mxu0 0.0
    %357 = vmatpush1.msra.mxu0 0.0
    %358 = vmatprep.subr.mxu0 0.0
    %359 = vmatpush1.msra.mxu0 0.0
    %360 = vmatprep.subr.mxu0 0.0
    %361 = vmatpush1.msra.mxu0 0.0
    %362 = vmatprep.subr.mxu0 0.0
    %363 = vmatpush1.msra.mxu0 0.0
    %364 = vmatprep.subr.mxu0 0.0
    %365 = vmatpush1.msra.mxu0 0.0
    %366 = vmatprep.subr.mxu0 0.0
    %367 = vmatpush1.msra.mxu0 0.0
    %368 = vmatprep.subr.mxu0 0.0
    %369 = vmatpush1.msra.mxu0 0.0
    %370 = vmatprep.subr.mxu0 0.0
    %371 = vmatpush1.msra.mxu0 0.0
    %372 = vmatprep.subr.mxu0 0.0
    %373 = vmatpush1.msra.mxu0 0.0
    %374 = vmatprep.subr.mxu0 0.0
    %375 = vmatpush1.msra.mxu0 0.0
    %376 = vmatprep.subr.mxu0 0.0
    %377 = vmatpush1.msra.mxu0 0.0
    %378 = vmatprep.subr.mxu0 0.0
    %379 = vmatpush1.msra.mxu0 0.0
    %380 = vmatprep.subr.mxu0 0.0
    %381 = vmatpush1.msra.mxu0 0.0
    %382 = vmatprep.subr.mxu0 0.0
    %383 = vmatpush1.msra.mxu0 0.0
    %384 = vmatprep.subr.mxu0 0.0
    %385 = vmatpush1.msra.mxu0 0.0
    %386 = vmatprep.subr.mxu0 0.0
    %387 = vmatpush1.msra.mxu0 0.0
    %388 = vmatprep.subr.mxu0 0.0
    %389 = vmatpush1.msra.mxu0 0.0
    %390 = vmatprep.subr.mxu0 0.0
    %391 = vmatpush1.msra.mxu0 0.0
    %392 = vmatprep.subr.mxu0 0.0
    %393 = vmatpush1.msra.mxu0 0.0
    %394 = vmatprep.subr.mxu0 0.0
    %395 = vmatpush1.msra.mxu0 0.0
    %396 = vmatprep.subr.mxu0 0.0
    %397 = vmatpush1.msra.mxu0 0.0
    %398 = vmatprep.mubr.f32.mxu0 0.0
    %399 = vmatmul.mubr.f32.gmra.mrb[0].mxu0 %v332
    %v400 = vpop.f32.mrb[0].mxu0
    %v401 = vadd.f32 0.0, %v400
    %v402 = vpop.f32.mrb[0].mxu0
    %403 = vdwg.mxu0
    %v405 = vrot.slane %v401, 7
    %v407 = vadd.f32 %v191, %v405
    %v408 = vxor.u32 %v407, 2147483648
    %v409 = vmul.f32 %v408, 1.442695
    %v410 = vpow.pop %v409
    %v411 = vadd.f32 %v410, 1.0
    %v412 = vrcp.pop %v411
    %v413 = vmul.f32 1.0, %v412
    %v414 = vadd.f32 %v401, %v307
    %v416 = vrot.slane %v414, 7
    %417 = vrot.lane.b32.xlu0 %v416, 64
    %v418 = vpop.permute.xlu0 %417
    %v420 = vmul.f32 %v413, %v418
    %422 = vrot.lane.b32.xlu0 %v420, 64
    %v423 = vpop.permute.xlu0 %422
    %v425 = vadd.f32 %v191, %v423
    %v426 = vtanh.pop %v425
    %v427 = vsub.f32 1.0, %v413
    %429 = vrot.lane.b32.xlu0 %v426, 96
    %v430 = vpop.permute.xlu0 %429
    %v432 = vmul.f32 %v427, %v430
    %v433 = vrot.slane %v328, 7
    %v435 = vmul.f32 %v413, %v433
    %v436 = vadd.f32 %v432, %v435
    %v438 = vrot.slane %v436, 1
    %439 = vrot.lane.b32.xlu0 %v438, 96
    %v440 = vpop.permute.xlu0 %439
    %v441 = vsel %vm120, %v440, 0
    %443 = vmatprep.subr.mxu0 0.0
    %444 = vmatpush1.msra.mxu0 %v218
    %445 = vmatprep.subr.mxu0 0.0
    %446 = vmatpush1.msra.mxu0 %v219
    %447 = vmatprep.subr.mxu0 0.0
    %448 = vmatpush1.msra.mxu0 %v220
    %449 = vmatprep.subr.mxu0 0.0
    %450 = vmatpush1.msra.mxu0 %v221
    %451 = vmatprep.subr.mxu0 0.0
    %452 = vmatpush1.msra.mxu0 0.0
    %453 = vmatprep.subr.mxu0 0.0
    %454 = vmatpush1.msra.mxu0 0.0
    %455 = vmatprep.subr.mxu0 0.0
    %456 = vmatpush1.msra.mxu0 0.0
    %457 = vmatprep.subr.mxu0 0.0
    %458 = vmatpush1.msra.mxu0 0.0
    %459 = vmatprep.subr.mxu0 0.0
    %460 = vmatpush1.msra.mxu0 0.0
    %461 = vmatprep.subr.mxu0 0.0
    %462 = vmatpush1.msra.mxu0 0.0
    %463 = vmatprep.subr.mxu0 0.0
    %464 = vmatpush1.msra.mxu0 0.0
    %465 = vmatprep.subr.mxu0 0.0
    %466 = vmatpush1.msra.mxu0 0.0
    %467 = vmatprep.subr.mxu0 0.0
    %468 = vmatpush1.msra.mxu0 0.0
    %469 = vmatprep.subr.mxu0 0.0
    %470 = vmatpush1.msra.mxu0 0.0
    %471 = vmatprep.subr.mxu0 0.0
    %472 = vmatpush1.msra.mxu0 0.0
    %473 = vmatprep.subr.mxu0 0.0
    %474 = vmatpush1.msra.mxu0 0.0
    %475 = vmatprep.subr.mxu0 0.0
    %476 = vmatpush1.msra.mxu0 0.0
    %477 = vmatprep.subr.mxu0 0.0
    %478 = vmatpush1.msra.mxu0 0.0
    %479 = vmatprep.subr.mxu0 0.0
    %480 = vmatpush1.msra.mxu0 0.0
    %481 = vmatprep.subr.mxu0 0.0
    %482 = vmatpush1.msra.mxu0 0.0
    %483 = vmatprep.subr.mxu0 0.0
    %484 = vmatpush1.msra.mxu0 0.0
    %485 = vmatprep.subr.mxu0 0.0
    %486 = vmatpush1.msra.mxu0 0.0
    %487 = vmatprep.subr.mxu0 0.0
    %488 = vmatpush1.msra.mxu0 0.0
    %489 = vmatprep.subr.mxu0 0.0
    %490 = vmatpush1.msra.mxu0 0.0
    %491 = vmatprep.subr.mxu0 0.0
    %492 = vmatpush1.msra.mxu0 0.0
    %493 = vmatprep.subr.mxu0 0.0
    %494 = vmatpush1.msra.mxu0 0.0
    %495 = vmatprep.subr.mxu0 0.0
    %496 = vmatpush1.msra.mxu0 0.0
    %497 = vmatprep.subr.mxu0 0.0
    %498 = vmatpush1.msra.mxu0 0.0
    %499 = vmatprep.subr.mxu0 0.0
    %500 = vmatpush1.msra.mxu0 0.0
    %501 = vmatprep.subr.mxu0 0.0
    %502 = vmatpush1.msra.mxu0 0.0
    %503 = vmatprep.subr.mxu0 0.0
    %504 = vmatpush1.msra.mxu0 0.0
    %505 = vmatprep.subr.mxu0 0.0
    %506 = vmatpush1.msra.mxu0 0.0
    %507 = vmatprep.mubr.f32.mxu0 0.0
    %508 = vmatmul.mubr.f32.gmra.mrb[0].mxu0 %v441
    %v509 = vpop.f32.mrb[0].mxu0
    %v510 = vadd.f32 0.0, %v509
    %v511 = vpop.f32.mrb[0].mxu0
    %512 = vdwg.mxu0
    %v514 = vrot.slane %v510, 6
    %v516 = vadd.f32 %v191, %v514
    %v517 = vxor.u32 %v516, 2147483648
    %v518 = vmul.f32 %v517, 1.442695
    %v519 = vpow.pop %v518
    %v520 = vadd.f32 %v519, 1.0
    %v521 = vrcp.pop %v520
    %v522 = vmul.f32 1.0, %v521
    %v523 = vadd.f32 %v510, %v307
    %v525 = vrot.slane %v523, 6
    %526 = vrot.lane.b32.xlu0 %v525, 64
    %v527 = vpop.permute.xlu0 %526
    %v529 = vmul.f32 %v522, %v527
    %531 = vrot.lane.b32.xlu0 %v529, 64
    %v532 = vpop.permute.xlu0 %531
    %v534 = vadd.f32 %v191, %v532
    %v535 = vtanh.pop %v534
    %v536 = vsub.f32 1.0, %v522
    %538 = vrot.lane.b32.xlu0 %v535, 96
    %v539 = vpop.permute.xlu0 %538
    %v541 = vmul.f32 %v536, %v539
    %v542 = vrot.slane %v436, 7
    %v544 = vmul.f32 %v522, %v542
    %v545 = vadd.f32 %v541, %v544
    %v547 = vrot.slane %v545, 2
    %548 = vrot.lane.b32.xlu0 %v547, 96
    %v549 = vpop.permute.xlu0 %548
    %v550 = vsel %vm120, %v549, 0
    %552 = vmatprep.subr.mxu0 0.0
    %553 = vmatpush1.msra.mxu0 %v218
    %554 = vmatprep.subr.mxu0 0.0
    %555 = vmatpush1.msra.mxu0 %v219
    %556 = vmatprep.subr.mxu0 0.0
    %557 = vmatpush1.msra.mxu0 %v220
    %558 = vmatprep.subr.mxu0 0.0
    %559 = vmatpush1.msra.mxu0 %v221
    %560 = vmatprep.subr.mxu0 0.0
    %561 = vmatpush1.msra.mxu0 0.0
    %562 = vmatprep.subr.mxu0 0.0
    %563 = vmatpush1.msra.mxu0 0.0
    %564 = vmatprep.subr.mxu0 0.0
    %565 = vmatpush1.msra.mxu0 0.0
    %566 = vmatprep.subr.mxu0 0.0
    %567 = vmatpush1.msra.mxu0 0.0
    %568 = vmatprep.subr.mxu0 0.0
    %569 = vmatpush1.msra.mxu0 0.0
    %570 = vmatprep.subr.mxu0 0.0
    %571 = vmatpush1.msra.mxu0 0.0
    %572 = vmatprep.subr.mxu0 0.0
    %573 = vmatpush1.msra.mxu0 0.0
    %574 = vmatprep.subr.mxu0 0.0
    %575 = vmatpush1.msra.mxu0 0.0
    %576 = vmatprep.subr.mxu0 0.0
    %577 = vmatpush1.msra.mxu0 0.0
    %578 = vmatprep.subr.mxu0 0.0
    %579 = vmatpush1.msra.mxu0 0.0
    %580 = vmatprep.subr.mxu0 0.0
    %581 = vmatpush1.msra.mxu0 0.0
    %582 = vmatprep.subr.mxu0 0.0
    %583 = vmatpush1.msra.mxu0 0.0
    %584 = vmatprep.subr.mxu0 0.0
    %585 = vmatpush1.msra.mxu0 0.0
    %586 = vmatprep.subr.mxu0 0.0
    %587 = vmatpush1.msra.mxu0 0.0
    %588 = vmatprep.subr.mxu0 0.0
    %589 = vmatpush1.msra.mxu0 0.0
    %590 = vmatprep.subr.mxu0 0.0
    %591 = vmatpush1.msra.mxu0 0.0
    %592 = vmatprep.subr.mxu0 0.0
    %593 = vmatpush1.msra.mxu0 0.0
    %594 = vmatprep.subr.mxu0 0.0
    %595 = vmatpush1.msra.mxu0 0.0
    %596 = vmatprep.subr.mxu0 0.0
    %597 = vmatpush1.msra.mxu0 0.0
    %598 = vmatprep.subr.mxu0 0.0
    %599 = vmatpush1.msra.mxu0 0.0
    %600 = vmatprep.subr.mxu0 0.0
    %601 = vmatpush1.msra.mxu0 0.0
    %602 = vmatprep.subr.mxu0 0.0
    %603 = vmatpush1.msra.mxu0 0.0
    %604 = vmatprep.subr.mxu0 0.0
    %605 = vmatpush1.msra.mxu0 0.0
    %606 = vmatprep.subr.mxu0 0.0
    %607 = vmatpush1.msra.mxu0 0.0
    %608 = vmatprep.subr.mxu0 0.0
    %609 = vmatpush1.msra.mxu0 0.0
    %610 = vmatprep.subr.mxu0 0.0
    %611 = vmatpush1.msra.mxu0 0.0
    %612 = vmatprep.subr.mxu0 0.0
    %613 = vmatpush1.msra.mxu0 0.0
    %614 = vmatprep.subr.mxu0 0.0
    %615 = vmatpush1.msra.mxu0 0.0
    %616 = vmatprep.mubr.f32.mxu0 0.0
    %617 = vmatmul.mubr.f32.gmra.mrb[0].mxu0 %v550
    %v618 = vpop.f32.mrb[0].mxu0
    %v619 = vadd.f32 0.0, %v618
    %v620 = vpop.f32.mrb[0].mxu0
    %621 = vdwg.mxu0
    %v623 = vrot.slane %v619, 5
    %v625 = vadd.f32 %v191, %v623
    %v626 = vxor.u32 %v625, 2147483648
    %v627 = vmul.f32 %v626, 1.442695
    %v628 = vpow.pop %v627
    %v629 = vadd.f32 %v628, 1.0
    %v630 = vrcp.pop %v629
    %v631 = vmul.f32 1.0, %v630
    %v632 = vadd.f32 %v619, %v307
    %v634 = vrot.slane %v632, 5
    %635 = vrot.lane.b32.xlu0 %v634, 64
    %v636 = vpop.permute.xlu0 %635
    %v638 = vmul.f32 %v631, %v636
    %640 = vrot.lane.b32.xlu0 %v638, 64
    %v641 = vpop.permute.xlu0 %640
    %v643 = vadd.f32 %v191, %v641
    %v644 = vtanh.pop %v643
    %v645 = vsub.f32 1.0, %v631
    %647 = vrot.lane.b32.xlu0 %v644, 96
    %v648 = vpop.permute.xlu0 %647
    %v650 = vmul.f32 %v645, %v648
    %v651 = vrot.slane %v545, 7
    %v653 = vmul.f32 %v631, %v651
    %v654 = vadd.f32 %v650, %v653
    %v656 = vrot.slane %v654, 3
    %657 = vrot.lane.b32.xlu0 %v656, 96
    %v658 = vpop.permute.xlu0 %657
    %v659 = vsel %vm120, %v658, 0
    %661 = vmatprep.subr.mxu0 0.0
    %662 = vmatpush1.msra.mxu0 %v218
    %663 = vmatprep.subr.mxu0 0.0
    %664 = vmatpush1.msra.mxu0 %v219
    %665 = vmatprep.subr.mxu0 0.0
    %666 = vmatpush1.msra.mxu0 %v220
    %667 = vmatprep.subr.mxu0 0.0
    %668 = vmatpush1.msra.mxu0 %v221
    %669 = vmatprep.subr.mxu0 0.0
    %670 = vmatpush1.msra.mxu0 0.0
    %671 = vmatprep.subr.mxu0 0.0
    %672 = vmatpush1.msra.mxu0 0.0
    %673 = vmatprep.subr.mxu0 0.0
    %674 = vmatpush1.msra.mxu0 0.0
    %675 = vmatprep.subr.mxu0 0.0
    %676 = vmatpush1.msra.mxu0 0.0
    %677 = vmatprep.subr.mxu0 0.0
    %678 = vmatpush1.msra.mxu0 0.0
    %679 = vmatprep.subr.mxu0 0.0
    %680 = vmatpush1.msra.mxu0 0.0
    %681 = vmatprep.subr.mxu0 0.0
    %682 = vmatpush1.msra.mxu0 0.0
    %683 = vmatprep.subr.mxu0 0.0
    %684 = vmatpush1.msra.mxu0 0.0
    %685 = vmatprep.subr.mxu0 0.0
    %686 = vmatpush1.msra.mxu0 0.0
    %687 = vmatprep.subr.mxu0 0.0
    %688 = vmatpush1.msra.mxu0 0.0
    %689 = vmatprep.subr.mxu0 0.0
    %690 = vmatpush1.msra.mxu0 0.0
    %691 = vmatprep.subr.mxu0 0.0
    %692 = vmatpush1.msra.mxu0 0.0
    %693 = vmatprep.subr.mxu0 0.0
    %694 = vmatpush1.msra.mxu0 0.0
    %695 = vmatprep.subr.mxu0 0.0
    %696 = vmatpush1.msra.mxu0 0.0
    %697 = vmatprep.subr.mxu0 0.0
    %698 = vmatpush1.msra.mxu0 0.0
    %699 = vmatprep.subr.mxu0 0.0
    %700 = vmatpush1.msra.mxu0 0.0
    %701 = vmatprep.subr.mxu0 0.0
    %702 = vmatpush1.msra.mxu0 0.0
    %703 = vmatprep.subr.mxu0 0.0
    %704 = vmatpush1.msra.mxu0 0.0
    %705 = vmatprep.subr.mxu0 0.0
    %706 = vmatpush1.msra.mxu0 0.0
    %707 = vmatprep.subr.mxu0 0.0
    %708 = vmatpush1.msra.mxu0 0.0
    %709 = vmatprep.subr.mxu0 0.0
    %710 = vmatpush1.msra.mxu0 0.0
    %711 = vmatprep.subr.mxu0 0.0
    %712 = vmatpush1.msra.mxu0 0.0
    %713 = vmatprep.subr.mxu0 0.0
    %714 = vmatpush1.msra.mxu0 0.0
    %715 = vmatprep.subr.mxu0 0.0
    %716 = vmatpush1.msra.mxu0 0.0
    %717 = vmatprep.subr.mxu0 0.0
    %718 = vmatpush1.msra.mxu0 0.0
    %719 = vmatprep.subr.mxu0 0.0
    %720 = vmatpush1.msra.mxu0 0.0
    %721 = vmatprep.subr.mxu0 0.0
    %722 = vmatpush1.msra.mxu0 0.0
    %723 = vmatprep.subr.mxu0 0.0
    %724 = vmatpush1.msra.mxu0 0.0
    %725 = vmatprep.mubr.f32.mxu0 0.0
    %726 = vmatmul.mubr.f32.gmra.mrb[0].mxu0 %v659
    %v727 = vpop.f32.mrb[0].mxu0
    %v728 = vadd.f32 0.0, %v727
    %v729 = vpop.f32.mrb[0].mxu0
    %730 = vdwg.mxu0
    %v732 = vrot.slane %v728, 4
    %v734 = vadd.f32 %v191, %v732
    %v735 = vxor.u32 %v734, 2147483648
    %v736 = vmul.f32 %v735, 1.442695
    %v737 = vpow.pop %v736
    %v738 = vadd.f32 %v737, 1.0
    %v739 = vrcp.pop %v738
    %v740 = vmul.f32 1.0, %v739
    %v741 = vadd.f32 %v728, %v307
    %v743 = vrot.slane %v741, 4
    %744 = vrot.lane.b32.xlu0 %v743, 64
    %v745 = vpop.permute.xlu0 %744
    %v747 = vmul.f32 %v740, %v745
    %749 = vrot.lane.b32.xlu0 %v747, 64
    %v750 = vpop.permute.xlu0 %749
    %v752 = vadd.f32 %v191, %v750
    %v753 = vtanh.pop %v752
    %v754 = vsub.f32 1.0, %v740
    %756 = vrot.lane.b32.xlu0 %v753, 96
    %v757 = vpop.permute.xlu0 %756
    %v759 = vmul.f32 %v754, %v757
    %v760 = vrot.slane %v654, 7
    %v762 = vmul.f32 %v740, %v760
    %v763 = vadd.f32 %v759, %v762
    %v765 = vrot.slane %v763, 4
    %766 = vrot.lane.b32.xlu0 %v765, 96
    %v767 = vpop.permute.xlu0 %766
    %v768 = vsel %vm120, %v767, 0
    %770 = vmatprep.subr.mxu0 0.0
    %771 = vmatpush1.msra.mxu0 %v218
    %772 = vmatprep.subr.mxu0 0.0
    %773 = vmatpush1.msra.mxu0 %v219
    %774 = vmatprep.subr.mxu0 0.0
    %775 = vmatpush1.msra.mxu0 %v220
    %776 = vmatprep.subr.mxu0 0.0
    %777 = vmatpush1.msra.mxu0 %v221
    %778 = vmatprep.subr.mxu0 0.0
    %779 = vmatpush1.msra.mxu0 0.0
    %780 = vmatprep.subr.mxu0 0.0
    %781 = vmatpush1.msra.mxu0 0.0
    %782 = vmatprep.subr.mxu0 0.0
    %783 = vmatpush1.msra.mxu0 0.0
    %784 = vmatprep.subr.mxu0 0.0
    %785 = vmatpush1.msra.mxu0 0.0
    %786 = vmatprep.subr.mxu0 0.0
    %787 = vmatpush1.msra.mxu0 0.0
    %788 = vmatprep.subr.mxu0 0.0
    %789 = vmatpush1.msra.mxu0 0.0
    %790 = vmatprep.subr.mxu0 0.0
    %791 = vmatpush1.msra.mxu0 0.0
    %792 = vmatprep.subr.mxu0 0.0
    %793 = vmatpush1.msra.mxu0 0.0
    %794 = vmatprep.subr.mxu0 0.0
    %795 = vmatpush1.msra.mxu0 0.0
    %796 = vmatprep.subr.mxu0 0.0
    %797 = vmatpush1.msra.mxu0 0.0
    %798 = vmatprep.subr.mxu0 0.0
    %799 = vmatpush1.msra.mxu0 0.0
    %800 = vmatprep.subr.mxu0 0.0
    %801 = vmatpush1.msra.mxu0 0.0
    %802 = vmatprep.subr.mxu0 0.0
    %803 = vmatpush1.msra.mxu0 0.0
    %804 = vmatprep.subr.mxu0 0.0
    %805 = vmatpush1.msra.mxu0 0.0
    %806 = vmatprep.subr.mxu0 0.0
    %807 = vmatpush1.msra.mxu0 0.0
    %808 = vmatprep.subr.mxu0 0.0
    %809 = vmatpush1.msra.mxu0 0.0
    %810 = vmatprep.subr.mxu0 0.0
    %811 = vmatpush1.msra.mxu0 0.0
    %812 = vmatprep.subr.mxu0 0.0
    %813 = vmatpush1.msra.mxu0 0.0
    %814 = vmatprep.subr.mxu0 0.0
    %815 = vmatpush1.msra.mxu0 0.0
    %816 = vmatprep.subr.mxu0 0.0
    %817 = vmatpush1.msra.mxu0 0.0
    %818 = vmatprep.subr.mxu0 0.0
    %819 = vmatpush1.msra.mxu0 0.0
    %820 = vmatprep.subr.mxu0 0.0
    %821 = vmatpush1.msra.mxu0 0.0
    %822 = vmatprep.subr.mxu0 0.0
    %823 = vmatpush1.msra.mxu0 0.0
    %824 = vmatprep.subr.mxu0 0.0
    %825 = vmatpush1.msra.mxu0 0.0
    %826 = vmatprep.subr.mxu0 0.0
    %827 = vmatpush1.msra.mxu0 0.0
    %828 = vmatprep.subr.mxu0 0.0
    %829 = vmatpush1.msra.mxu0 0.0
    %830 = vmatprep.subr.mxu0 0.0
    %831 = vmatpush1.msra.mxu0 0.0
    %832 = vmatprep.subr.mxu0 0.0
    %833 = vmatpush1.msra.mxu0 0.0
    %834 = vmatprep.mubr.f32.mxu0 0.0
    %835 = vmatmul.mubr.f32.gmra.mrb[0].mxu0 %v768
    %v836 = vpop.f32.mrb[0].mxu0
    %v837 = vadd.f32 0.0, %v836
    %v838 = vpop.f32.mrb[0].mxu0
    %839 = vdwg.mxu0
    %v841 = vrot.slane %v837, 3
    %v843 = vadd.f32 %v191, %v841
    %v844 = vxor.u32 %v843, 2147483648
    %v845 = vmul.f32 %v844, 1.442695
    %v846 = vpow.pop %v845
    %v847 = vadd.f32 %v846, 1.0
    %v848 = vrcp.pop %v847
    %v849 = vmul.f32 1.0, %v848
    %v850 = vadd.f32 %v837, %v307
    %v852 = vrot.slane %v850, 3
    %853 = vrot.lane.b32.xlu0 %v852, 64
    %v854 = vpop.permute.xlu0 %853
    %v856 = vmul.f32 %v849, %v854
    %858 = vrot.lane.b32.xlu0 %v856, 64
    %v859 = vpop.permute.xlu0 %858
    %v861 = vadd.f32 %v191, %v859
    %v862 = vtanh.pop %v861
    %v863 = vsub.f32 1.0, %v849
    %865 = vrot.lane.b32.xlu0 %v862, 96
    %v866 = vpop.permute.xlu0 %865
    %v868 = vmul.f32 %v863, %v866
    %v869 = vrot.slane %v763, 7
    %v871 = vmul.f32 %v849, %v869
    %v872 = vadd.f32 %v868, %v871
    %v874 = vrot.slane %v872, 5
    %875 = vrot.lane.b32.xlu0 %v874, 96
    %v876 = vpop.permute.xlu0 %875
    %v877 = vsel %vm120, %v876, 0
    %879 = vmatprep.subr.mxu0 0.0
    %880 = vmatpush1.msra.mxu0 %v218
    %881 = vmatprep.subr.mxu0 0.0
    %882 = vmatpush1.msra.mxu0 %v219
    %883 = vmatprep.subr.mxu0 0.0
    %884 = vmatpush1.msra.mxu0 %v220
    %885 = vmatprep.subr.mxu0 0.0
    %886 = vmatpush1.msra.mxu0 %v221
    %887 = vmatprep.subr.mxu0 0.0
    %888 = vmatpush1.msra.mxu0 0.0
    %889 = vmatprep.subr.mxu0 0.0
    %890 = vmatpush1.msra.mxu0 0.0
    %891 = vmatprep.subr.mxu0 0.0
    %892 = vmatpush1.msra.mxu0 0.0
    %893 = vmatprep.subr.mxu0 0.0
    %894 = vmatpush1.msra.mxu0 0.0
    %895 = vmatprep.subr.mxu0 0.0
    %896 = vmatpush1.msra.mxu0 0.0
    %897 = vmatprep.subr.mxu0 0.0
    %898 = vmatpush1.msra.mxu0 0.0
    %899 = vmatprep.subr.mxu0 0.0
    %900 = vmatpush1.msra.mxu0 0.0
    %901 = vmatprep.subr.mxu0 0.0
    %902 = vmatpush1.msra.mxu0 0.0
    %903 = vmatprep.subr.mxu0 0.0
    %904 = vmatpush1.msra.mxu0 0.0
    %905 = vmatprep.subr.mxu0 0.0
    %906 = vmatpush1.msra.mxu0 0.0
    %907 = vmatprep.subr.mxu0 0.0
    %908 = vmatpush1.msra.mxu0 0.0
    %909 = vmatprep.subr.mxu0 0.0
    %910 = vmatpush1.msra.mxu0 0.0
    %911 = vmatprep.subr.mxu0 0.0
    %912 = vmatpush1.msra.mxu0 0.0
    %913 = vmatprep.subr.mxu0 0.0
    %914 = vmatpush1.msra.mxu0 0.0
    %915 = vmatprep.subr.mxu0 0.0
    %916 = vmatpush1.msra.mxu0 0.0
    %917 = vmatprep.subr.mxu0 0.0
    %918 = vmatpush1.msra.mxu0 0.0
    %919 = vmatprep.subr.mxu0 0.0
    %920 = vmatpush1.msra.mxu0 0.0
    %921 = vmatprep.subr.mxu0 0.0
    %922 = vmatpush1.msra.mxu0 0.0
    %923 = vmatprep.subr.mxu0 0.0
    %924 = vmatpush1.msra.mxu0 0.0
    %925 = vmatprep.subr.mxu0 0.0
    %926 = vmatpush1.msra.mxu0 0.0
    %927 = vmatprep.subr.mxu0 0.0
    %928 = vmatpush1.msra.mxu0 0.0
    %929 = vmatprep.subr.mxu0 0.0
    %930 = vmatpush1.msra.mxu0 0.0
    %931 = vmatprep.subr.mxu0 0.0
    %932 = vmatpush1.msra.mxu0 0.0
    %933 = vmatprep.subr.mxu0 0.0
    %934 = vmatpush1.msra.mxu0 0.0
    %935 = vmatprep.subr.mxu0 0.0
    %936 = vmatpush1.msra.mxu0 0.0
    %937 = vmatprep.subr.mxu0 0.0
    %938 = vmatpush1.msra.mxu0 0.0
    %939 = vmatprep.subr.mxu0 0.0
    %940 = vmatpush1.msra.mxu0 0.0
    %941 = vmatprep.subr.mxu0 0.0
    %942 = vmatpush1.msra.mxu0 0.0
    %943 = vmatprep.mubr.f32.mxu0 0.0
    %944 = vmatmul.mubr.f32.gmra.mrb[0].mxu0 %v877
    %v945 = vpop.f32.mrb[0].mxu0
    %v946 = vadd.f32 0.0, %v945
    %v947 = vpop.f32.mrb[0].mxu0
    %948 = vdwg.mxu0
    %v950 = vrot.slane %v946, 2
    %v952 = vadd.f32 %v191, %v950
    %v953 = vxor.u32 %v952, 2147483648
    %v954 = vmul.f32 %v953, 1.442695
    %v955 = vpow.pop %v954
    %v956 = vadd.f32 %v955, 1.0
    %v957 = vrcp.pop %v956
    %v958 = vmul.f32 1.0, %v957
    %v959 = vadd.f32 %v946, %v307
    %v961 = vrot.slane %v959, 2
    %962 = vrot.lane.b32.xlu0 %v961, 64
    %v963 = vpop.permute.xlu0 %962
    %v965 = vmul.f32 %v958, %v963
    %967 = vrot.lane.b32.xlu0 %v965, 64
    %v968 = vpop.permute.xlu0 %967
    %v970 = vadd.f32 %v191, %v968
    %v971 = vtanh.pop %v970
    %v972 = vsub.f32 1.0, %v958
    %974 = vrot.lane.b32.xlu0 %v971, 96
    %v975 = vpop.permute.xlu0 %974
    %v977 = vmul.f32 %v972, %v975
    %v978 = vrot.slane %v872, 7
    %v980 = vmul.f32 %v958, %v978
    %v981 = vadd.f32 %v977, %v980
    %v983 = vrot.slane %v981, 6
    %984 = vrot.lane.b32.xlu0 %v983, 96
    %v985 = vpop.permute.xlu0 %984
    %v986 = vsel %vm120, %v985, 0
    %988 = vmatprep.subr.mxu0 0.0
    %989 = vmatpush1.msra.mxu0 %v218
    %990 = vmatprep.subr.mxu0 0.0
    %991 = vmatpush1.msra.mxu0 %v219
    %992 = vmatprep.subr.mxu0 0.0
    %993 = vmatpush1.msra.mxu0 %v220
    %994 = vmatprep.subr.mxu0 0.0
    %995 = vmatpush1.msra.mxu0 %v221
    %996 = vmatprep.subr.mxu0 0.0
    %997 = vmatpush1.msra.mxu0 0.0
    %998 = vmatprep.subr.mxu0 0.0
    %999 = vmatpush1.msra.mxu0 0.0
    %1000 = vmatprep.subr.mxu0 0.0
    %1001 = vmatpush1.msra.mxu0 0.0
    %1002 = vmatprep.subr.mxu0 0.0
    %1003 = vmatpush1.msra.mxu0 0.0
    %1004 = vmatprep.subr.mxu0 0.0
    %1005 = vmatpush1.msra.mxu0 0.0
    %1006 = vmatprep.subr.mxu0 0.0
    %1007 = vmatpush1.msra.mxu0 0.0
    %1008 = vmatprep.subr.mxu0 0.0
    %1009 = vmatpush1.msra.mxu0 0.0
    %1010 = vmatprep.subr.mxu0 0.0
    %1011 = vmatpush1.msra.mxu0 0.0
    %1012 = vmatprep.subr.mxu0 0.0
    %1013 = vmatpush1.msra.mxu0 0.0
    %1014 = vmatprep.subr.mxu0 0.0
    %1015 = vmatpush1.msra.mxu0 0.0
    %1016 = vmatprep.subr.mxu0 0.0
    %1017 = vmatpush1.msra.mxu0 0.0
    %1018 = vmatprep.subr.mxu0 0.0
    %1019 = vmatpush1.msra.mxu0 0.0
    %1020 = vmatprep.subr.mxu0 0.0
    %1021 = vmatpush1.msra.mxu0 0.0
    %1022 = vmatprep.subr.mxu0 0.0
    %1023 = vmatpush1.msra.mxu0 0.0
    %1024 = vmatprep.subr.mxu0 0.0
    %1025 = vmatpush1.msra.mxu0 0.0
    %1026 = vmatprep.subr.mxu0 0.0
    %1027 = vmatpush1.msra.mxu0 0.0
    %1028 = vmatprep.subr.mxu0 0.0
    %1029 = vmatpush1.msra.mxu0 0.0
    %1030 = vmatprep.subr.mxu0 0.0
    %1031 = vmatpush1.msra.mxu0 0.0
    %1032 = vmatprep.subr.mxu0 0.0
    %1033 = vmatpush1.msra.mxu0 0.0
    %1034 = vmatprep.subr.mxu0 0.0
    %1035 = vmatpush1.msra.mxu0 0.0
    %1036 = vmatprep.subr.mxu0 0.0
    %1037 = vmatpush1.msra.mxu0 0.0
    %1038 = vmatprep.subr.mxu0 0.0
    %1039 = vmatpush1.msra.mxu0 0.0
    %1040 = vmatprep.subr.mxu0 0.0
    %1041 = vmatpush1.msra.mxu0 0.0
    %1042 = vmatprep.subr.mxu0 0.0
    %1043 = vmatpush1.msra.mxu0 0.0
    %1044 = vmatprep.subr.mxu0 0.0
    %1045 = vmatpush1.msra.mxu0 0.0
    %1046 = vmatprep.subr.mxu0 0.0
    %1047 = vmatpush1.msra.mxu0 0.0
    %1048 = vmatprep.subr.mxu0 0.0
    %1049 = vmatpush1.msra.mxu0 0.0
    %1050 = vmatprep.subr.mxu0 0.0
    %1051 = vmatpush1.msra.mxu0 0.0
    %1052 = vmatprep.mubr.f32.mxu0 0.0
    %1053 = vmatmul.mubr.f32.gmra.mrb[0].mxu0 %v986
    %v1054 = vpop.f32.mrb[0].mxu0
    %v1055 = vadd.f32 0.0, %v1054
    %v1056 = vpop.f32.mrb[0].mxu0
    %1057 = vdwg.mxu0
    %v1059 = vrot.slane %v1055, 1
    %v1061 = vadd.f32 %v191, %v1059
    %v1062 = vxor.u32 %v1061, 2147483648
    %v1063 = vmul.f32 %v1062, 1.442695
    %v1064 = vpow.pop %v1063
    %v1065 = vadd.f32 %v1064, 1.0
    %v1066 = vrcp.pop %v1065
    %v1067 = vmul.f32 1.0, %v1066
    %v1068 = vadd.f32 %v1055, %v307
    %v1070 = vrot.slane %v1068, 1
    %1071 = vrot.lane.b32.xlu0 %v1070, 64
    %v1072 = vpop.permute.xlu0 %1071
    %v1074 = vmul.f32 %v1067, %v1072
    %1076 = vrot.lane.b32.xlu0 %v1074, 64
    %v1077 = vpop.permute.xlu0 %1076
    %v1079 = vadd.f32 %v191, %v1077
    %v1080 = vtanh.pop %v1079
    %v1081 = vsub.f32 1.0, %v1067
    %1083 = vrot.lane.b32.xlu0 %v1080, 96
    %v1084 = vpop.permute.xlu0 %1083
    %v1086 = vmul.f32 %v1081, %v1084
    %v1087 = vrot.slane %v981, 7
    %v1089 = vmul.f32 %v1067, %v1087
    %v1090 = vadd.f32 %v1086, %v1089
    %1093 = vrot.lane.b32.xlu0 %v547, 32
    %v1094 = vpop.permute.xlu0 %1093
    %1096 = vrot.lane.b32.xlu0 %v656, 64
    %v1097 = vpop.permute.xlu0 %1096
    %1101 = vrot.lane.b32.xlu0 %v983, 32
    %v1102 = vpop.permute.xlu0 %1101
    %v1105 = vrot.slane %v1090, 7
    %1106 = vrot.lane.b32.xlu0 %v1105, 64
    %v1107 = vpop.permute.xlu0 %1106
    %v1109 = vsel %vm120, %v331, %v438
    %vm1110 = vcmask 523264
    %v1111 = vsel %vm1110, %v1109, %v1094
    %vm1112 = vcmask 785408
    %v1113 = vsel %vm1112, %v1111, %v1097
    %v1114 = vsel %vm120, %v767, %v874
    %v1115 = vsel %vm1110, %v1114, %v1102
    %v1116 = vsel %vm1112, %v1115, %v1107
    %v1117 = vlaneseq
    %v1118 = vshrl.u32 %v1117, 7
    %v1119 = vsub.s32 0, %v1118
    %v1120 = vrot.slane %v1113, %v1119
    %v1121 = vlaneseq
    %v1122 = vshrl.u32 %v1121, 7
    %v1123 = vsub.s32 0, %v1122
    %v1124 = vrot.slane %v1116, %v1123
    %v1127 = vcombine.low %v1120, %v1124
    %1129 = vst [vmem:[#allocation2] sm:$0xff] %v1127
    %v1130 = vlaneseq
    %v1131 = vshrl.u32 %v1130, 7
    %v1132 = vsub.s32 1, %v1131
    %v1133 = vrot.slane %v20, %v1132
    %v1134 = vlaneseq
    %v1135 = vshrl.u32 %v1134, 7
    %v1136 = vsub.s32 2, %v1135
    %v1137 = vrot.slane %v20, %v1136
    %v1140 = vmul.f32 %v1113, %v1133
    %v1141 = vmul.f32 %v1116, %v1137
    %vm1142 = vcmask 1040384
    %v1143 = vsel %vm1142, %v1140, 0.0
    %v1144 = vsel %vm1142, %v1141, 0.0
    %v1145 = vadd.f32 %v1143, %v1144
    %1146 = vadd.xlane.f32.xlu0 %v1145
    %v1147 = vpop.xlane.xlu0 %1146
    %v1148 = vlaneseq
    %v1149 = vshrl.u32 %v1148, 7
    %v1150 = vsub.s32 3, %v1149
    %v1151 = vrot.slane %v20, %v1150
    %v1153 = vadd.f32 %v1147, %v1151
    %v1154 = vxor.u32 %v1153, 2147483648
    %v1155 = vmul.f32 %v1154, 1.442695
    %v1156 = vpow.pop %v1155
    %v1157 = vadd.f32 %v1156, 1.0
    %v1158 = vrcp.pop %v1157
    %v1159 = vmul.f32 1.0, %v1158
    %v1160 = vlaneseq
    %v1161 = vshrl.u32 %v1160, 7
    %v1162 = vsub.s32 0, %v1161
    %v1163 = vrot.slane %v1159, %v1162
    %vm1164 = vcmask 3072
    %1165 = vst.msk [vmem:[%s5] sm:$0xf] %vm1164, %v1163
    // Predicated region
    $region18: #{discriminator_forward.1} parent=1 // pred_check
      _
    $region19: #{discriminator_forward.1} parent=1 // pred_check_branch
      %1167 = sbr.rel (0) target = $region21
    $region20: #{discriminator_forward.1} parent=1 // pred_region
      %s1169 = ssub.s32 128, 128
      %1170 = vsyncadd [#allocation3], %s1169
      %s1172 = sshll.u32 [#allocation2], 4
      %s1173 = int_to_ptr.vmem [resolvable:$true] %s1172
      %1175 = dma.vmem_to_hbm [thread:$0]  %s1173, 128, %s4, [#allocation3]
    $region21: #{discriminator_forward.1} parent=1 // pred_fallthru
      _
    // Predicated region
    $region22: #{discriminator_forward.1} parent=1 // pred_check
      _
    $region23: #{discriminator_forward.1} parent=1 // pred_check_branch
      %1177 = sbr.rel (0) target = $region25
    $region24: #{discriminator_forward.1} parent=1 // pred_region
      _
    $region25: #{discriminator_forward.1} parent=1 // pred_fallthru
      _
    // Predicated region
    $region26: #{discriminator_forward.1} parent=1 // pred_check
      _
    $region27: #{discriminator_forward.1} parent=1 // pred_check_branch
      %1179 = sbr.rel (0) target = $region29
    $region28: #{discriminator_forward.1} parent=1 // pred_region
      %1180 = dma.done [#allocation3], 128
    $region29: #{discriminator_forward.1} parent=1 // pred_fallthru
      _
    // Predicated region
    $region30: #{discriminator_forward.1} parent=1 // pred_check
      _
    $region31: #{discriminator_forward.1} parent=1 // pred_check_branch
      %1182 = sbr.rel (0) target = $region33
    $region32: #{discriminator_forward.1} parent=1 // pred_region
      _
    $region33: #{discriminator_forward.1} parent=1 // pred_fallthru
      _
    %1183 = vsyncpa [#allocation3], 1

</llo_original>
